<compile_context>
chip_gen: v7x
topology: tpu7x:2x2x1
jax: 0.10.0
libtpu: 0.0.40
codegen_flags: <defaults>
</compile_context>

<pallas_src>
import functools

import jax
import jax.numpy as jnp
from jax.experimental import pallas as pl
from jax.experimental.pallas import tpu as pltpu


# ----------------------------- configuration ("FeatureDimensions") -----------------------------
CLASSIC_DIM = 32         # RGCN input / hidden dim
GRAPH_OUTPUT_DIM = 16    # RGCN output dim
NUM_RELATIONS = 4        # RelationTypes.NUM_RELATIONS
NUM_NODES = 16           # nodes per graph (small synthetic graph)
BATCH_GRAPHS = 8         # graphs fused into one pallas_call (grid axis)
PACK_WIDTH = 128         # lane-dense packed output width: [ h | out | zero pad ]


# --------------------------------------- Pallas kernel -----------------------------------------
def _rgcn_layer(x, a_rs, w_rel_ref, w_root_ref, b_ref, *, num_nodes, num_relations):
    """One RGCN layer: X @ W_root + b + sum_r (A_r @ X) @ W_r.

    x        : (N, D_in)     activations (value)
    a_rs     : (R*N, N)      row-stacked normalized adjacency (value)
    w_rel_ref: (R, D_in, D_out) ref, w_root_ref: (D_in, D_out) ref, b_ref: (1, D_out) ref
    """
    out = jnp.dot(x, w_root_ref[...], preferred_element_type=jnp.float32) + b_ref[...]
    ax = jnp.dot(a_rs, x, preferred_element_type=jnp.float32)           # (R*N, D_in)
    for r in range(num_relations):                                       # static unroll, R = 4
        ax_r = ax[r * num_nodes:(r + 1) * num_nodes, :]                  # sublane-aligned slice
        out = out + jnp.dot(ax_r, w_rel_ref[r], preferred_element_type=jnp.float32)
    return out


def _extractor_kernel(x_ref, a_ref, wrel1_ref, wroot1_ref, b1_ref,
                      wrel2_ref, wroot2_ref, b2_ref, o_ref,
                      *, num_nodes, num_relations, d1, d2, pack_width):
    """Layer1 + ReLU + (eval) Dropout + Layer2 for one graph; one lane-dense packed store."""
    x = x_ref[...]                                     # (N, D_in)
    a_rs = a_ref[...]                                  # (R*N, N)

    h = _rgcn_layer(x, a_rs, wrel1_ref, wroot1_ref, b1_ref,
                    num_nodes=num_nodes, num_relations=num_relations)
    h = jnp.maximum(h, 0.0)                            # ReLU; Dropout(0.2) -> identity in eval

    out = _rgcn_layer(h, a_rs, wrel2_ref, wroot2_ref, b2_ref,
                      num_nodes=num_nodes, num_relations=num_relations)

    pad = jnp.zeros((num_nodes, pack_width - d1 - d2), jnp.float32)
    o_ref[...] = jnp.concatenate([h, out, pad], axis=-1)   # single unmasked (N, 128) tile store


def rgcn_forward_batched(x, a_rs, params1, params2):
    """Batched forward. x: (B, N, D_in), a_rs: (B, R*N, N). Returns (h (B,N,D1), out (B,N,D2))."""
    b, n, d_in = x.shape
    r = NUM_RELATIONS
    w_rel1, w_root1, b1 = params1
    w_rel2, w_root2, b2 = params2
    d1 = w_root1.shape[1]
    d2 = w_root2.shape[1]
    assert a_rs.shape == (b, r * n, n)
    assert d1 + d2 <= PACK_WIDTH

    flops = 2 * b * n * (d_in * d1 + r * n * d_in + r * d_in * d1
                         + d1 * d2 + r * n * d1 + r * d1 * d2)
    bytes_accessed = 4 * (b * (n * d_in + r * n * n + n * PACK_WIDTH)
                          + r * d_in * d1 + d_in * d1 + d1
                          + r * d1 * d2 + d1 * d2 + d2)

    kernel = functools.partial(_extractor_kernel, num_nodes=n, num_relations=r,
                               d1=d1, d2=d2, pack_width=PACK_WIDTH)

    packed = pl.pallas_call(
        kernel,
        out_shape=jax.ShapeDtypeStruct((b, n, PACK_WIDTH), jnp.float32),
        grid=(b,),
        in_specs=[
            pl.BlockSpec((None, n, d_in), lambda i: (i, 0, 0)),      # per-graph features
            pl.BlockSpec((None, r * n, n), lambda i: (i, 0, 0)),     # per-graph adjacency
            pl.BlockSpec((r, d_in, d1), lambda i: (0, 0, 0)),        # shared weights (resident)
            pl.BlockSpec((d_in, d1), lambda i: (0, 0)),
            pl.BlockSpec((1, d1), lambda i: (0, 0)),
            pl.BlockSpec((r, d1, d2), lambda i: (0, 0, 0)),
            pl.BlockSpec((d1, d2), lambda i: (0, 0)),
            pl.BlockSpec((1, d2), lambda i: (0, 0)),
        ],
        out_specs=pl.BlockSpec((None, n, PACK_WIDTH), lambda i: (i, 0, 0)),
        compiler_params=pltpu.CompilerParams(dimension_semantics=("parallel",)),
        cost_estimate=pl.CostEstimate(flops=flops, transcendentals=0,
                                      bytes_accessed=bytes_accessed),
    )(x, a_rs, w_rel1, w_root1, b1, w_rel2, w_root2, b2)

    h = packed[..., :d1]
    out = packed[..., d1:d1 + d2]
    return h, out


# ------------------------------- host-side glue (plain JAX) ------------------------------------
def build_graph(num_nodes, num_relations, type_offset=0):
    """Deterministic synthetic HeterogeneousGraphBuilder: ring graph in both directions,
    relation type cycling over edges. Returns edge_index (2, E) int32, edge_type (E,) int32."""
    src = jnp.arange(num_nodes, dtype=jnp.int32)
    dst = (src + 1) % num_nodes
    edge_src = jnp.concatenate([src, dst])
    edge_dst = jnp.concatenate([dst, src])
    edge_index = jnp.stack([edge_src, edge_dst], axis=0)
    edge_type = (jnp.arange(edge_index.shape[1], dtype=jnp.int32) + type_offset) % num_relations
    return edge_index, edge_type


def build_rowstack_adjacency(edge_index, edge_type, num_nodes, num_relations):
    """Row-stacked normalized adjacency A_rs = vstack_r(A_r), A_r[i, j] = 1/deg_r(i) for j->i.
    One scatter + one row-normalize; hoisted out of the per-forward path (build once per graph)."""
    src, dst = edge_index[0], edge_index[1]
    a = jnp.zeros((num_relations * num_nodes, num_nodes), jnp.float32)
    a = a.at[edge_type * num_nodes + dst, src].add(1.0)
    deg = jnp.sum(a, axis=-1, keepdims=True)
    return a / jnp.maximum(deg, 1.0)


def init_rgcn_params(key, d_in, d_out, num_relations):
    """Relation weights stored pre-stacked (R, D_in, D_out); bias stored as (1, D_out)."""
    k1, k2 = jax.random.split(key)
    scale = 1.0 / jnp.sqrt(jnp.float32(d_in))
    w_rel = jax.random.normal(k1, (num_relations, d_in, d_out), jnp.float32) * scale
    w_root = jax.random.normal(k2, (d_in, d_out), jnp.float32) * scale
    bias = jnp.zeros((1, d_out), jnp.float32)
    return w_rel, w_root, bias


def graph_feature_extractor(classic_features, edge_index, edge_type, params1, params2):
    """Single-graph forward matching the PyTorch module. Returns (hidden, output)."""
    n, _ = classic_features.shape
    d1 = params1[1].shape[1]
    d2 = params2[1].shape[1]
    if edge_index.shape[1] == 0:
        # Module's zero-edge fallback: zero hidden and zero output (it does NOT apply W_root).
        return jnp.zeros((n, d1), jnp.float32), jnp.zeros((n, d2), jnp.float32)
    a_rs = build_rowstack_adjacency(edge_index, edge_type, n, NUM_RELATIONS)
    h, out = rgcn_forward_batched(classic_features[None], a_rs[None], params1, params2)
    return h[0], out[0]


def _reference(x, a_rs, params1, params2):
    """Pure-JAX reference for correctness checking (batched)."""
    b, n, _ = x.shape
    r = NUM_RELATIONS

    def layer(xx, w_rel, w_root, bias):
        out = jnp.einsum("bnd,do->bno", xx, w_root) + bias
        ax = jnp.einsum("bmn,bnd->bmd", a_rs, xx).reshape(b, r, n, -1)
        return out + jnp.einsum("brnd,rdo->bno", ax, w_rel)

    w_rel1, w_root1, b1 = params1
    w_rel2, w_root2, b2 = params2
    h = jnp.maximum(layer(x, w_rel1, w_root1, b1), 0.0)
    return h, layer(h, w_rel2, w_root2, b2)


# -------------------------------------------- main ---------------------------------------------
if __name__ == "__main__":
    key = jax.random.PRNGKey(0)
    k_feat, k_p1, k_p2 = jax.random.split(key, 3)

    # Batched node features: B small graphs, N nodes each.
    x = jax.random.normal(k_feat, (BATCH_GRAPHS, NUM_NODES, CLASSIC_DIM), jnp.float32)

    # Graph structure / adjacency built ONCE (hoisted out of the per-forward path).
    a_list = []
    for g in range(BATCH_GRAPHS):
        ei, et = build_graph(NUM_NODES, NUM_RELATIONS, type_offset=g)
        a_list.append(build_rowstack_adjacency(ei, et, NUM_NODES, NUM_RELATIONS))
    a_rs = jnp.stack(a_list, axis=0)                       # (B, R*N, N)

    params1 = init_rgcn_params(k_p1, CLASSIC_DIM, CLASSIC_DIM, NUM_RELATIONS)
    params2 = init_rgcn_params(k_p2, CLASSIC_DIM, GRAPH_OUTPUT_DIM, NUM_RELATIONS)

    fwd = jax.jit(rgcn_forward_batched)
    h, graph_features = fwd(x, a_rs, params1, params2)
    graph_features = jax.block_until_ready(graph_features)

    # Correctness check against pure-JAX reference.
    h_ref, out_ref = _reference(x, a_rs, params1, params2)
    assert graph_features.shape == (BATCH_GRAPHS, NUM_NODES, GRAPH_OUTPUT_DIM)
    assert jnp.allclose(h, h_ref, atol=1e-4, rtol=1e-4)
    assert jnp.allclose(graph_features, out_ref, atol=1e-4, rtol=1e-4)

    # Single-graph module-parity path (graph 0) and zero-edge fallback.
    ei0, et0 = build_graph(NUM_NODES, NUM_RELATIONS, type_offset=0)
    h1, o1 = graph_feature_extractor(x[0], ei0, et0, params1, params2)
    assert jnp.allclose(h1, h_ref[0], atol=1e-4, rtol=1e-4)
    assert jnp.allclose(o1, out_ref[0], atol=1e-4, rtol=1e-4)

    hz, oz = graph_feature_extractor(x[0], jnp.zeros((2, 0), jnp.int32),
                                     jnp.zeros((0,), jnp.int32), params1, params2)
    assert not bool(jnp.any(oz)) and not bool(jnp.any(hz))

    print("KERNEL_OK")
</pallas_src>

<mosaic_0001>
module attributes {stable_mosaic.version = 11 : i64} {
  func.func @_extractor_kernel(%arg0: i32, %arg1: memref<1x16x32xf32, #tpu.memory_space<vmem>>, %arg2: memref<1x64x16xf32, #tpu.memory_space<vmem>>, %arg3: memref<4x32x32xf32, #tpu.memory_space<vmem>>, %arg4: memref<32x32xf32, #tpu.memory_space<vmem>>, %arg5: memref<1x32xf32, #tpu.memory_space<vmem>>, %arg6: memref<4x32x16xf32, #tpu.memory_space<vmem>>, %arg7: memref<32x16xf32, #tpu.memory_space<vmem>>, %arg8: memref<1x16xf32, #tpu.memory_space<vmem>>, %arg9: memref<1x16x128xf32, #tpu.memory_space<vmem>>) attributes {dimension_semantics = [#tpu.dimension_semantics<parallel>], iteration_bounds = array<i64: 8>, scalar_prefetch = 0 : i64, scratch_operands = 0 : i64, tpu.core_type = #tpu.core_type<tc>, window_params = [{transform_indices = @transform_0, window_bounds = array<i64: 1, 16, 32>}, {transform_indices = @transform_1, window_bounds = array<i64: 1, 64, 16>}, {pipeline_mode = #tpu.pipeline_mode<synchronous>, transform_indices = @transform_2, window_bounds = array<i64: 4, 32, 32>}, {pipeline_mode = #tpu.pipeline_mode<synchronous>, transform_indices = @transform_3, window_bounds = array<i64: 32, 32>}, {pipeline_mode = #tpu.pipeline_mode<synchronous>, transform_indices = @transform_4, window_bounds = array<i64: 1, 32>}, {pipeline_mode = #tpu.pipeline_mode<synchronous>, transform_indices = @transform_5, window_bounds = array<i64: 4, 32, 16>}, {pipeline_mode = #tpu.pipeline_mode<synchronous>, transform_indices = @transform_6, window_bounds = array<i64: 32, 16>}, {pipeline_mode = #tpu.pipeline_mode<synchronous>, transform_indices = @transform_7, window_bounds = array<i64: 1, 16>}, {transform_indices = @transform_8, window_bounds = array<i64: 1, 16, 128>}]} {
    %c0 = arith.constant 0 : index
    %c0_0 = arith.constant 0 : index
    %c0_1 = arith.constant 0 : index
    %0 = vector.load %arg1[%c0, %c0_0, %c0_1] : memref<1x16x32xf32, #tpu.memory_space<vmem>>, vector<1x16x32xf32>
    %1 = vector.shape_cast %0 : vector<1x16x32xf32> to vector<16x32xf32>
    %c0_2 = arith.constant 0 : index
    %c0_3 = arith.constant 0 : index
    %c0_4 = arith.constant 0 : index
    %2 = vector.load %arg2[%c0_2, %c0_3, %c0_4] : memref<1x64x16xf32, #tpu.memory_space<vmem>>, vector<1x64x16xf32>
    %3 = vector.shape_cast %2 : vector<1x64x16xf32> to vector<64x16xf32>
    %c0_5 = arith.constant 0 : index
    %c0_6 = arith.constant 0 : index
    %4 = vector.load %arg4[%c0_5, %c0_6] : memref<32x32xf32, #tpu.memory_space<vmem>>, vector<32x32xf32>
    %cst = arith.constant dense<0.000000e+00> : vector<16x32xf32>
    %5 = tpu.matmul %1, %4, %cst {dimension_numbers = #tpu.dot_dimension_numbers<[1], [0], [0], [1], [0, 0, 1, 1], [], []>} : vector<16x32xf32>, vector<32x32xf32>, vector<16x32xf32> -> vector<16x32xf32>
    %c0_7 = arith.constant 0 : index
    %c0_8 = arith.constant 0 : index
    %6 = vector.load %arg5[%c0_7, %c0_8] : memref<1x32xf32, #tpu.memory_space<vmem>>, vector<1x32xf32>
    %7 = vector.broadcast %6 : vector<1x32xf32> to vector<16x32xf32>
    %8 = arith.addf %5, %7 : vector<16x32xf32>
    %cst_9 = arith.constant dense<0.000000e+00> : vector<64x32xf32>
    %9 = tpu.matmul %3, %1, %cst_9 {dimension_numbers = #tpu.dot_dimension_numbers<[1], [0], [0], [1], [0, 0, 1, 1], [], []>} : vector<64x16xf32>, vector<16x32xf32>, vector<64x32xf32> -> vector<64x32xf32>
    %10 = vector.extract_strided_slice %9 {offsets = [0, 0], sizes = [16, 32], strides = [1, 1]} : vector<64x32xf32> to vector<16x32xf32>
    %c0_10 = arith.constant 0 : index
    %c0_11 = arith.constant 0 : index
    %c0_12 = arith.constant 0 : index
    %11 = vector.load %arg3[%c0_10, %c0_11, %c0_12] : memref<4x32x32xf32, #tpu.memory_space<vmem>>, vector<1x32x32xf32>
    %12 = vector.shape_cast %11 : vector<1x32x32xf32> to vector<32x32xf32>
    %cst_13 = arith.constant dense<0.000000e+00> : vector<16x32xf32>
    %13 = tpu.matmul %10, %12, %cst_13 {dimension_numbers = #tpu.dot_dimension_numbers<[1], [0], [0], [1], [0, 0, 1, 1], [], []>} : vector<16x32xf32>, vector<32x32xf32>, vector<16x32xf32> -> vector<16x32xf32>
    %14 = arith.addf %8, %13 : vector<16x32xf32>
    %15 = vector.extract_strided_slice %9 {offsets = [16, 0], sizes = [16, 32], strides = [1, 1]} : vector<64x32xf32> to vector<16x32xf32>
    %c1 = arith.constant 1 : index
    %c0_14 = arith.constant 0 : index
    %c0_15 = arith.constant 0 : index
    %16 = vector.load %arg3[%c1, %c0_14, %c0_15] : memref<4x32x32xf32, #tpu.memory_space<vmem>>, vector<1x32x32xf32>
    %17 = vector.shape_cast %16 : vector<1x32x32xf32> to vector<32x32xf32>
    %cst_16 = arith.constant dense<0.000000e+00> : vector<16x32xf32>
    %18 = tpu.matmul %15, %17, %cst_16 {dimension_numbers = #tpu.dot_dimension_numbers<[1], [0], [0], [1], [0, 0, 1, 1], [], []>} : vector<16x32xf32>, vector<32x32xf32>, vector<16x32xf32> -> vector<16x32xf32>
    %19 = arith.addf %14, %18 : vector<16x32xf32>
    %20 = vector.extract_strided_slice %9 {offsets = [32, 0], sizes = [16, 32], strides = [1, 1]} : vector<64x32xf32> to vector<16x32xf32>
    %c2 = arith.constant 2 : index
    %c0_17 = arith.constant 0 : index
    %c0_18 = arith.constant 0 : index
    %21 = vector.load %arg3[%c2, %c0_17, %c0_18] : memref<4x32x32xf32, #tpu.memory_space<vmem>>, vector<1x32x32xf32>
    %22 = vector.shape_cast %21 : vector<1x32x32xf32> to vector<32x32xf32>
    %cst_19 = arith.constant dense<0.000000e+00> : vector<16x32xf32>
    %23 = tpu.matmul %20, %22, %cst_19 {dimension_numbers = #tpu.dot_dimension_numbers<[1], [0], [0], [1], [0, 0, 1, 1], [], []>} : vector<16x32xf32>, vector<32x32xf32>, vector<16x32xf32> -> vector<16x32xf32>
    %24 = arith.addf %19, %23 : vector<16x32xf32>
    %25 = vector.extract_strided_slice %9 {offsets = [48, 0], sizes = [16, 32], strides = [1, 1]} : vector<64x32xf32> to vector<16x32xf32>
    %c3 = arith.constant 3 : index
    %c0_20 = arith.constant 0 : index
    %c0_21 = arith.constant 0 : index
    %26 = vector.load %arg3[%c3, %c0_20, %c0_21] : memref<4x32x32xf32, #tpu.memory_space<vmem>>, vector<1x32x32xf32>
    %27 = vector.shape_cast %26 : vector<1x32x32xf32> to vector<32x32xf32>
    %cst_22 = arith.constant dense<0.000000e+00> : vector<16x32xf32>
    %28 = tpu.matmul %25, %27, %cst_22 {dimension_numbers = #tpu.dot_dimension_numbers<[1], [0], [0], [1], [0, 0, 1, 1], [], []>} : vector<16x32xf32>, vector<32x32xf32>, vector<16x32xf32> -> vector<16x32xf32>
    %29 = arith.addf %24, %28 : vector<16x32xf32>
    %cst_23 = arith.constant 0.000000e+00 : f32
    %30 = vector.broadcast %cst_23 : f32 to vector<16x32xf32>
    %31 = arith.maximumf %29, %30 : vector<16x32xf32>
    %c0_24 = arith.constant 0 : index
    %c0_25 = arith.constant 0 : index
    %32 = vector.load %arg7[%c0_24, %c0_25] : memref<32x16xf32, #tpu.memory_space<vmem>>, vector<32x16xf32>
    %cst_26 = arith.constant dense<0.000000e+00> : vector<16x16xf32>
    %33 = tpu.matmul %31, %32, %cst_26 {dimension_numbers = #tpu.dot_dimension_numbers<[1], [0], [0], [1], [0, 0, 1, 1], [], []>} : vector<16x32xf32>, vector<32x16xf32>, vector<16x16xf32> -> vector<16x16xf32>
    %c0_27 = arith.constant 0 : index
    %c0_28 = arith.constant 0 : index
    %34 = vector.load %arg8[%c0_27, %c0_28] : memref<1x16xf32, #tpu.memory_space<vmem>>, vector<1x16xf32>
    %35 = vector.broadcast %34 : vector<1x16xf32> to vector<16x16xf32>
    %36 = arith.addf %33, %35 : vector<16x16xf32>
    %cst_29 = arith.constant dense<0.000000e+00> : vector<64x32xf32>
    %37 = tpu.matmul %3, %31, %cst_29 {dimension_numbers = #tpu.dot_dimension_numbers<[1], [0], [0], [1], [0, 0, 1, 1], [], []>} : vector<64x16xf32>, vector<16x32xf32>, vector<64x32xf32> -> vector<64x32xf32>
    %38 = vector.extract_strided_slice %37 {offsets = [0, 0], sizes = [16, 32], strides = [1, 1]} : vector<64x32xf32> to vector<16x32xf32>
    %c0_30 = arith.constant 0 : index
    %c0_31 = arith.constant 0 : index
    %c0_32 = arith.constant 0 : index
    %39 = vector.load %arg6[%c0_30, %c0_31, %c0_32] : memref<4x32x16xf32, #tpu.memory_space<vmem>>, vector<1x32x16xf32>
    %40 = vector.shape_cast %39 : vector<1x32x16xf32> to vector<32x16xf32>
    %cst_33 = arith.constant dense<0.000000e+00> : vector<16x16xf32>
    %41 = tpu.matmul %38, %40, %cst_33 {dimension_numbers = #tpu.dot_dimension_numbers<[1], [0], [0], [1], [0, 0, 1, 1], [], []>} : vector<16x32xf32>, vector<32x16xf32>, vector<16x16xf32> -> vector<16x16xf32>
    %42 = arith.addf %36, %41 : vector<16x16xf32>
    %43 = vector.extract_strided_slice %37 {offsets = [16, 0], sizes = [16, 32], strides = [1, 1]} : vector<64x32xf32> to vector<16x32xf32>
    %c1_34 = arith.constant 1 : index
    %c0_35 = arith.constant 0 : index
    %c0_36 = arith.constant 0 : index
    %44 = vector.load %arg6[%c1_34, %c0_35, %c0_36] : memref<4x32x16xf32, #tpu.memory_space<vmem>>, vector<1x32x16xf32>
    %45 = vector.shape_cast %44 : vector<1x32x16xf32> to vector<32x16xf32>
    %cst_37 = arith.constant dense<0.000000e+00> : vector<16x16xf32>
    %46 = tpu.matmul %43, %45, %cst_37 {dimension_numbers = #tpu.dot_dimension_numbers<[1], [0], [0], [1], [0, 0, 1, 1], [], []>} : vector<16x32xf32>, vector<32x16xf32>, vector<16x16xf32> -> vector<16x16xf32>
    %47 = arith.addf %42, %46 : vector<16x16xf32>
    %48 = vector.extract_strided_slice %37 {offsets = [32, 0], sizes = [16, 32], strides = [1, 1]} : vector<64x32xf32> to vector<16x32xf32>
    %c2_38 = arith.constant 2 : index
    %c0_39 = arith.constant 0 : index
    %c0_40 = arith.constant 0 : index
    %49 = vector.load %arg6[%c2_38, %c0_39, %c0_40] : memref<4x32x16xf32, #tpu.memory_space<vmem>>, vector<1x32x16xf32>
    %50 = vector.shape_cast %49 : vector<1x32x16xf32> to vector<32x16xf32>
    %cst_41 = arith.constant dense<0.000000e+00> : vector<16x16xf32>
    %51 = tpu.matmul %48, %50, %cst_41 {dimension_numbers = #tpu.dot_dimension_numbers<[1], [0], [0], [1], [0, 0, 1, 1], [], []>} : vector<16x32xf32>, vector<32x16xf32>, vector<16x16xf32> -> vector<16x16xf32>
    %52 = arith.addf %47, %51 : vector<16x16xf32>
    %53 = vector.extract_strided_slice %37 {offsets = [48, 0], sizes = [16, 32], strides = [1, 1]} : vector<64x32xf32> to vector<16x32xf32>
    %c3_42 = arith.constant 3 : index
    %c0_43 = arith.constant 0 : index
    %c0_44 = arith.constant 0 : index
    %54 = vector.load %arg6[%c3_42, %c0_43, %c0_44] : memref<4x32x16xf32, #tpu.memory_space<vmem>>, vector<1x32x16xf32>
    %55 = vector.shape_cast %54 : vector<1x32x16xf32> to vector<32x16xf32>
    %cst_45 = arith.constant dense<0.000000e+00> : vector<16x16xf32>
    %56 = tpu.matmul %53, %55, %cst_45 {dimension_numbers = #tpu.dot_dimension_numbers<[1], [0], [0], [1], [0, 0, 1, 1], [], []>} : vector<16x32xf32>, vector<32x16xf32>, vector<16x16xf32> -> vector<16x16xf32>
    %57 = arith.addf %52, %56 : vector<16x16xf32>
    %cst_46 = arith.constant 0.000000e+00 : f32
    %58 = vector.broadcast %cst_46 : f32 to vector<16x80xf32>
    %59 = tpu.concatenate %31, %57, %58 in 1 : vector<16x32xf32>, vector<16x16xf32>, vector<16x80xf32> -> vector<16x128xf32>
    %c0_47 = arith.constant 0 : index
    %c0_48 = arith.constant 0 : index
    %c0_49 = arith.constant 0 : index
    %60 = vector.load %arg9[%c0_47, %c0_48, %c0_49] : memref<1x16x128xf32, #tpu.memory_space<vmem>>, vector<1x16x128xf32>
    %61 = vector.shape_cast %60 : vector<1x16x128xf32> to vector<16x128xf32>
    %62 = vector.shape_cast %59 : vector<16x128xf32> to vector<1x16x128xf32>
    tpu.vector_store %arg9[%c0_47, %c0_48, %c0_49], %62 {strides = array<i32>} : memref<1x16x128xf32, #tpu.memory_space<vmem>>, vector<1x16x128xf32>,
    return
  }
  func.func @transform_0(%arg0: i32) -> (i32, i32, i32) {
    %c0_i32 = arith.constant 0 : i32
    %c0_i32_0 = arith.constant 0 : i32
    %c0_i32_1 = arith.constant 0 : i32
    return %arg0, %c0_i32, %c0_i32_0 : i32, i32, i32
  }
  func.func @transform_1(%arg0: i32) -> (i32, i32, i32) {
    %c0_i32 = arith.constant 0 : i32
    %c0_i32_0 = arith.constant 0 : i32
    %c0_i32_1 = arith.constant 0 : i32
    return %arg0, %c0_i32, %c0_i32_0 : i32, i32, i32
  }
  func.func @transform_2(%arg0: i32) -> (i32, i32, i32) {
    %c0_i32 = arith.constant 0 : i32
    %c0_i32_0 = arith.constant 0 : i32
    %c0_i32_1 = arith.constant 0 : i32
    %c0_i32_2 = arith.constant 0 : i32
    return %c0_i32, %c0_i32_0, %c0_i32_1 : i32, i32, i32
  }
  func.func @transform_3(%arg0: i32) -> (i32, i32) {
    %c0_i32 = arith.constant 0 : i32
    %c0_i32_0 = arith.constant 0 : i32
    %c0_i32_1 = arith.constant 0 : i32
    return %c0_i32, %c0_i32_0 : i32, i32
  }
  func.func @transform_4(%arg0: i32) -> (i32, i32) {
    %c0_i32 = arith.constant 0 : i32
    %c0_i32_0 = arith.constant 0 : i32
    %c0_i32_1 = arith.constant 0 : i32
    return %c0_i32, %c0_i32_0 : i32, i32
  }
  func.func @transform_5(%arg0: i32) -> (i32, i32, i32) {
    %c0_i32 = arith.constant 0 : i32
    %c0_i32_0 = arith.constant 0 : i32
    %c0_i32_1 = arith.constant 0 : i32
    %c0_i32_2 = arith.constant 0 : i32
    return %c0_i32, %c0_i32_0, %c0_i32_1 : i32, i32, i32
  }
  func.func @transform_6(%arg0: i32) -> (i32, i32) {
    %c0_i32 = arith.constant 0 : i32
    %c0_i32_0 = arith.constant 0 : i32
    %c0_i32_1 = arith.constant 0 : i32
    return %c0_i32, %c0_i32_0 : i32, i32
  }
  func.func @transform_7(%arg0: i32) -> (i32, i32) {
    %c0_i32 = arith.constant 0 : i32
    %c0_i32_0 = arith.constant 0 : i32
    %c0_i32_1 = arith.constant 0 : i32
    return %c0_i32, %c0_i32_0 : i32, i32
  }
  func.func @transform_8(%arg0: i32) -> (i32, i32, i32) {
    %c0_i32 = arith.constant 0 : i32
    %c0_i32_0 = arith.constant 0 : i32
    %c0_i32_1 = arith.constant 0 : i32
    return %arg0, %c0_i32, %c0_i32_0 : i32, i32, i32
  }
}

</mosaic_0001>

<llo_original>
// kernel: rgcn_forward_batched.1
$region0: #{rgcn_forward_batched.1}
  #allocation0 [shape = 'u32[]', space=smem, size = 0x4, offset = 0x4, fixed_abs, tag = 'smem constant byte address 0x4 - core index']
  #allocation1 [shape = 'u32[144,128]{1,0:T(1,128)}', space=vmem, size = 0x12000, scoped, tag = 'internal scratch']
  %s0 = inlined_call_operand.vmem [shape: f32[8,16,32], index: 0, kind: input, shape index: {}]
  %s1 = inlined_call_operand.vmem [shape: f32[8,64,16], index: 1, kind: input, shape index: {}]
  %s2 = inlined_call_operand.vmem [shape: f32[4,32,32], index: 2, kind: input, shape index: {}]
  %s3 = inlined_call_operand.vmem [shape: f32[32,32], index: 3, kind: input, shape index: {}]
  %s4 = inlined_call_operand.vmem [shape: f32[1,32], index: 4, kind: input, shape index: {}]
  %s5 = inlined_call_operand.vmem [shape: f32[4,32,16], index: 5, kind: input, shape index: {}]
  %s6 = inlined_call_operand.vmem [shape: f32[32,16], index: 6, kind: input, shape index: {}]
  %s7 = inlined_call_operand.vmem [shape: f32[1,16], index: 7, kind: input, shape index: {}]
  %s8 = inlined_call_operand.vmem [shape: f32[8,16,128], index: 8, kind: output, shape index: {}]
  %s9 = sld [smem:[#allocation0]]
  $region65: #{rgcn_forward_batched.1} parent=0
    _
  %s11 = ssub.s32 1, %s9
  %s12 = scalar_select 0, %s11, %s9
  loop: start=0, step=1, limit=10
  $region2: #{rgcn_forward_batched.1} parent=0 // loop_pre_header
    _
  $region3: #{rgcn_forward_batched.1} parent=0 // loop_header
    %s14 = sphi 0, %s18
    %p15 = scmp.ge.s32.totalorder %s14, 10
    %s24 = sphi 0, %s26
    %s27 = sphi 0, %s24
    %s28 = sphi 0, %s27
    %s44 = sphi 0, %s28
    %s50 = sphi 0, %s52
    %s53 = sphi 0, %s50
    %s54 = sphi 0, %s53
    %s70 = sphi 0, %s54
    %s74 = sphi 0, %s74
    %s76 = sphi 0, %s74
    %s77 = sphi 0, %s76
    %s91 = sphi 0, %s77
    %s95 = sphi 0, %s95
    %s97 = sphi 0, %s95
    %s98 = sphi 0, %s97
    %s112 = sphi 0, %s98
    %s116 = sphi 0, %s116
    %s118 = sphi 0, %s116
    %s119 = sphi 0, %s118
    %s133 = sphi 0, %s119
    %s137 = sphi 0, %s137
    %s139 = sphi 0, %s137
    %s140 = sphi 0, %s139
    %s154 = sphi 0, %s140
    %s158 = sphi 0, %s158
    %s160 = sphi 0, %s158
    %s161 = sphi 0, %s160
    %s175 = sphi 0, %s161
    %s179 = sphi 0, %s179
    %s181 = sphi 0, %s179
    %s182 = sphi 0, %s181
    %s196 = sphi 0, %s182
    %s202 = sphi 0, %s204
    %s205 = sphi 0, %s202
    %s206 = sphi 0, %s205
    %s222 = sphi 0, %s206
  $region4: #{rgcn_forward_batched.1} parent=0 // loop_header_branch
    %17 = sbr.rel (%p15) target = $region8
  $region5: #{rgcn_forward_batched.1} parent=0 // loop_body
    %s19 = ssub.s32 %s14, 1
    %s20 = ssub.s32 %s14, 2
    %s21 = sadd.s32 %s14, 1
    %s22 = ssub.s32 %s14, %s21
    %p23 = scmp.eq.s32.totalorder %s22, 0
    %s25 = sadd.s32 %s24, 1
    %s26 = scalar_select %p23, %s24, %s25
    %p29 = pneg %p23
    %p30 = scmp.eq.s32.totalorder %s14, 7
    %p31 = por %p29, %p30
    %p32 = scmp.ne.s32.totalorder %s24, %s27
    %p33 = scmp.eq.s32.totalorder %s14, 0
    %p34 = por %p32, %p33
    %p35 = scmp.ne.s32.totalorder %s24, %s27
    %p36 = scmp.eq.s32.totalorder %s19, 7
    %p37 = por %p35, %p36
    %p38 = scmp.ne.s32.totalorder %s27, %s28
    %p39 = scmp.eq.s32.totalorder %s19, 0
    %p40 = por %p38, %p39
    %p41 = scmp.ne.s32.totalorder %s27, %s28
    %p42 = scmp.eq.s32.totalorder %s20, 7
    %p43 = por %p41, %p42
    %p45 = scmp.ne.s32.totalorder %s28, %s44
    %p46 = scmp.eq.s32.totalorder %s20, 0
    %p47 = por %p45, %p46
    %s48 = ssub.s32 %s14, %s21
    %p49 = scmp.eq.s32.totalorder %s48, 0
    %s51 = sadd.s32 %s50, 1
    %s52 = scalar_select %p49, %s50, %s51
    %p55 = pneg %p49
    %p56 = scmp.eq.s32.totalorder %s14, 7
    %p57 = por %p55, %p56
    %p58 = scmp.ne.s32.totalorder %s50, %s53
    %p59 = scmp.eq.s32.totalorder %s14, 0
    %p60 = por %p58, %p59
    %p61 = scmp.ne.s32.totalorder %s50, %s53
    %p62 = scmp.eq.s32.totalorder %s19, 7
    %p63 = por %p61, %p62
    %p64 = scmp.ne.s32.totalorder %s53, %s54
    %p65 = scmp.eq.s32.totalorder %s19, 0
    %p66 = por %p64, %p65
    %p67 = scmp.ne.s32.totalorder %s53, %s54
    %p68 = scmp.eq.s32.totalorder %s20, 7
    %p69 = por %p67, %p68
    %p71 = scmp.ne.s32.totalorder %s54, %s70
    %p72 = scmp.eq.s32.totalorder %s20, 0
    %p73 = por %p71, %p72
    %s75 = sadd.s32 %s74, 1
    %p78 = scmp.eq.s32.totalorder %s14, 7
    %p79 = scmp.ne.s32.totalorder %s74, %s76
    %p80 = scmp.eq.s32.totalorder %s14, 0
    %p81 = por %p79, %p80
    %p82 = scmp.ne.s32.totalorder %s74, %s76
    %p83 = scmp.eq.s32.totalorder %s19, 7
    %p84 = por %p82, %p83
    %p85 = scmp.ne.s32.totalorder %s76, %s77
    %p86 = scmp.eq.s32.totalorder %s19, 0
    %p87 = por %p85, %p86
    %p88 = scmp.ne.s32.totalorder %s76, %s77
    %p89 = scmp.eq.s32.totalorder %s20, 7
    %p90 = por %p88, %p89
    %p92 = scmp.ne.s32.totalorder %s77, %s91
    %p93 = scmp.eq.s32.totalorder %s20, 0
    %p94 = por %p92, %p93
    %s96 = sadd.s32 %s95, 1
    %p99 = scmp.eq.s32.totalorder %s14, 7
    %p100 = scmp.ne.s32.totalorder %s95, %s97
    %p101 = scmp.eq.s32.totalorder %s14, 0
    %p102 = por %p100, %p101
    %p103 = scmp.ne.s32.totalorder %s95, %s97
    %p104 = scmp.eq.s32.totalorder %s19, 7
    %p105 = por %p103, %p104
    %p106 = scmp.ne.s32.totalorder %s97, %s98
    %p107 = scmp.eq.s32.totalorder %s19, 0
    %p108 = por %p106, %p107
    %p109 = scmp.ne.s32.totalorder %s97, %s98
    %p110 = scmp.eq.s32.totalorder %s20, 7
    %p111 = por %p109, %p110
    %p113 = scmp.ne.s32.totalorder %s98, %s112
    %p114 = scmp.eq.s32.totalorder %s20, 0
    %p115 = por %p113, %p114
    %s117 = sadd.s32 %s116, 1
    %p120 = scmp.eq.s32.totalorder %s14, 7
    %p121 = scmp.ne.s32.totalorder %s116, %s118
    %p122 = scmp.eq.s32.totalorder %s14, 0
    %p123 = por %p121, %p122
    %p124 = scmp.ne.s32.totalorder %s116, %s118
    %p125 = scmp.eq.s32.totalorder %s19, 7
    %p126 = por %p124, %p125
    %p127 = scmp.ne.s32.totalorder %s118, %s119
    %p128 = scmp.eq.s32.totalorder %s19, 0
    %p129 = por %p127, %p128
    %p130 = scmp.ne.s32.totalorder %s118, %s119
    %p131 = scmp.eq.s32.totalorder %s20, 7
    %p132 = por %p130, %p131
    %p134 = scmp.ne.s32.totalorder %s119, %s133
    %p135 = scmp.eq.s32.totalorder %s20, 0
    %p136 = por %p134, %p135
    %s138 = sadd.s32 %s137, 1
    %p141 = scmp.eq.s32.totalorder %s14, 7
    %p142 = scmp.ne.s32.totalorder %s137, %s139
    %p143 = scmp.eq.s32.totalorder %s14, 0
    %p144 = por %p142, %p143
    %p145 = scmp.ne.s32.totalorder %s137, %s139
    %p146 = scmp.eq.s32.totalorder %s19, 7
    %p147 = por %p145, %p146
    %p148 = scmp.ne.s32.totalorder %s139, %s140
    %p149 = scmp.eq.s32.totalorder %s19, 0
    %p150 = por %p148, %p149
    %p151 = scmp.ne.s32.totalorder %s139, %s140
    %p152 = scmp.eq.s32.totalorder %s20, 7
    %p153 = por %p151, %p152
    %p155 = scmp.ne.s32.totalorder %s140, %s154
    %p156 = scmp.eq.s32.totalorder %s20, 0
    %p157 = por %p155, %p156
    %s159 = sadd.s32 %s158, 1
    %p162 = scmp.eq.s32.totalorder %s14, 7
    %p163 = scmp.ne.s32.totalorder %s158, %s160
    %p164 = scmp.eq.s32.totalorder %s14, 0
    %p165 = por %p163, %p164
    %p166 = scmp.ne.s32.totalorder %s158, %s160
    %p167 = scmp.eq.s32.totalorder %s19, 7
    %p168 = por %p166, %p167
    %p169 = scmp.ne.s32.totalorder %s160, %s161
    %p170 = scmp.eq.s32.totalorder %s19, 0
    %p171 = por %p169, %p170
    %p172 = scmp.ne.s32.totalorder %s160, %s161
    %p173 = scmp.eq.s32.totalorder %s20, 7
    %p174 = por %p172, %p173
    %p176 = scmp.ne.s32.totalorder %s161, %s175
    %p177 = scmp.eq.s32.totalorder %s20, 0
    %p178 = por %p176, %p177
    %s180 = sadd.s32 %s179, 1
    %p183 = scmp.eq.s32.totalorder %s14, 7
    %p184 = scmp.ne.s32.totalorder %s179, %s181
    %p185 = scmp.eq.s32.totalorder %s14, 0
    %p186 = por %p184, %p185
    %p187 = scmp.ne.s32.totalorder %s179, %s181
    %p188 = scmp.eq.s32.totalorder %s19, 7
    %p189 = por %p187, %p188
    %p190 = scmp.ne.s32.totalorder %s181, %s182
    %p191 = scmp.eq.s32.totalorder %s19, 0
    %p192 = por %p190, %p191
    %p193 = scmp.ne.s32.totalorder %s181, %s182
    %p194 = scmp.eq.s32.totalorder %s20, 7
    %p195 = por %p193, %p194
    %p197 = scmp.ne.s32.totalorder %s182, %s196
    %p198 = scmp.eq.s32.totalorder %s20, 0
    %p199 = por %p197, %p198
    %s200 = ssub.s32 %s14, %s21
    %p201 = scmp.eq.s32.totalorder %s200, 0
    %s203 = sadd.s32 %s202, 1
    %s204 = scalar_select %p201, %s202, %s203
    %p207 = pneg %p201
    %p208 = scmp.eq.s32.totalorder %s14, 7
    %p209 = por %p207, %p208
    %p210 = scmp.ne.s32.totalorder %s202, %s205
    %p211 = scmp.eq.s32.totalorder %s14, 0
    %p212 = por %p210, %p211
    %p213 = scmp.ne.s32.totalorder %s202, %s205
    %p214 = scmp.eq.s32.totalorder %s19, 7
    %p215 = por %p213, %p214
    %p216 = scmp.ne.s32.totalorder %s205, %s206
    %p217 = scmp.eq.s32.totalorder %s19, 0
    %p218 = por %p216, %p217
    %p219 = scmp.ne.s32.totalorder %s205, %s206
    %p220 = scmp.eq.s32.totalorder %s20, 7
    %p221 = por %p219, %p220
    %p223 = scmp.ne.s32.totalorder %s206, %s222
    %p224 = scmp.eq.s32.totalorder %s20, 0
    %p225 = por %p223, %p224
    %p226 = scmp.le.s32.totalorder 1, %s14
    %p227 = scmp.lt.s32.totalorder %s14, 9
    %p228 = pnand %p226, %p227
    %p229 = pneg %p228
    // Predicated region
    $region9: #{rgcn_forward_batched.1} parent=5 // pred_check
      _
    $region10: #{rgcn_forward_batched.1} parent=5 // pred_check_branch
      %231 = sbr.rel (%p228) target = $region12
    $region11: #{rgcn_forward_batched.1} parent=5 // pred_region
      %s232 = ssub.s32 %s14, 1
      // Predicated region
      $region13: #{rgcn_forward_batched.1} parent=11 // pred_check
        %p233 = pneg %p87
      $region14: #{rgcn_forward_batched.1} parent=11 // pred_check_branch
        %235 = sbr.rel (%p233) target = $region16
      $region15: #{rgcn_forward_batched.1} parent=11 // pred_region
        _
      $region16: #{rgcn_forward_batched.1} parent=11 // pred_fallthru
        _
      // Predicated region
      $region17: #{rgcn_forward_batched.1} parent=11 // pred_check
        %p236 = pneg %p108
      $region18: #{rgcn_forward_batched.1} parent=11 // pred_check_branch
        %238 = sbr.rel (%p236) target = $region20
      $region19: #{rgcn_forward_batched.1} parent=11 // pred_region
        _
      $region20: #{rgcn_forward_batched.1} parent=11 // pred_fallthru
        _
      // Predicated region
      $region21: #{rgcn_forward_batched.1} parent=11 // pred_check
        %p239 = pneg %p129
      $region22: #{rgcn_forward_batched.1} parent=11 // pred_check_branch
        %241 = sbr.rel (%p239) target = $region24
      $region23: #{rgcn_forward_batched.1} parent=11 // pred_region
        _
      $region24: #{rgcn_forward_batched.1} parent=11 // pred_fallthru
        _
      // Predicated region
      $region25: #{rgcn_forward_batched.1} parent=11 // pred_check
        %p242 = pneg %p150
      $region26: #{rgcn_forward_batched.1} parent=11 // pred_check_branch
        %244 = sbr.rel (%p242) target = $region28
      $region27: #{rgcn_forward_batched.1} parent=11 // pred_region
        _
      $region28: #{rgcn_forward_batched.1} parent=11 // pred_fallthru
        _
      // Predicated region
      $region29: #{rgcn_forward_batched.1} parent=11 // pred_check
        %p245 = pneg %p171
      $region30: #{rgcn_forward_batched.1} parent=11 // pred_check_branch
        %247 = sbr.rel (%p245) target = $region32
      $region31: #{rgcn_forward_batched.1} parent=11 // pred_region
        _
      $region32: #{rgcn_forward_batched.1} parent=11 // pred_fallthru
        _
      // Predicated region
      $region33: #{rgcn_forward_batched.1} parent=11 // pred_check
        %p248 = pneg %p192
      $region34: #{rgcn_forward_batched.1} parent=11 // pred_check_branch
        %250 = sbr.rel (%p248) target = $region36
      $region35: #{rgcn_forward_batched.1} parent=11 // pred_region
        _
      $region36: #{rgcn_forward_batched.1} parent=11 // pred_fallthru
        _
    $region12: #{rgcn_forward_batched.1} parent=5 // pred_fallthru
      _
    %p251 = scmp.lt.s32.totalorder %s14, 8
    // Predicated region
    $region37: #{rgcn_forward_batched.1} parent=5 // pred_check
      %p252 = pneg %p251
    $region38: #{rgcn_forward_batched.1} parent=5 // pred_check_branch
      %254 = sbr.rel (%p252) target = $region40
    $region39: #{rgcn_forward_batched.1} parent=5 // pred_region
      // Predicated region
      $region41: #{rgcn_forward_batched.1} parent=39 // pred_check
        %p255 = pneg %p34
      $region42: #{rgcn_forward_batched.1} parent=39 // pred_check_branch
        %257 = sbr.rel (%p255) target = $region44
      $region43: #{rgcn_forward_batched.1} parent=39 // pred_region
        %p258 = scmp.lt.s32.totalorder %s14, 7
        %s259 = scalar_select %p258, %s14, 7
        %s260 = smul.addr %s259, 2
        %s261 = smul.addr %s260, 8
        %s262 = scalar_lea.vmem %s0, %s261
      $region44: #{rgcn_forward_batched.1} parent=39 // pred_fallthru
        _
      // Predicated region
      $region45: #{rgcn_forward_batched.1} parent=39 // pred_check
        %p263 = pneg %p60
      $region46: #{rgcn_forward_batched.1} parent=39 // pred_check_branch
        %265 = sbr.rel (%p263) target = $region48
      $region47: #{rgcn_forward_batched.1} parent=39 // pred_region
        %p266 = scmp.lt.s32.totalorder %s14, 7
        %s267 = scalar_select %p266, %s14, 7
        %s268 = smul.addr %s267, 8
        %s269 = smul.addr %s268, 8
        %s270 = scalar_lea.vmem %s1, %s269
      $region48: #{rgcn_forward_batched.1} parent=39 // pred_fallthru
        _
    $region40: #{rgcn_forward_batched.1} parent=5 // pred_fallthru
      _
    %p271 = scmp.le.s32.totalorder 1, %s14
    %p272 = scmp.lt.s32.totalorder %s14, 9
    %p273 = pnand %p271, %p272
    %p274 = pneg %p273
    // Predicated region
    $region49: #{rgcn_forward_batched.1} parent=5 // pred_check
      _
    $region50: #{rgcn_forward_batched.1} parent=5 // pred_check_branch
      %276 = sbr.rel (%p273) target = $region52
    $region51: #{rgcn_forward_batched.1} parent=5 // pred_region
      %s277 = ssub.s32 %s14, 1
      %p278 = scmp.lt.s32.totalorder %s19, 7
      %s279 = scalar_select %p278, %s19, 7
      %s280 = smul.addr %s279, 2
      %s281 = smul.addr %s280, 8
      %s282 = scalar_lea.vmem %s0, %s281
      %p283 = pneg %p40
      %p284 = pneg %p37
      %p285 = scmp.lt.s32.totalorder %s19, 7
      %s286 = scalar_select %p285, %s19, 7
      %s287 = smul.addr %s286, 8
      %s288 = smul.addr %s287, 8
      %s289 = scalar_lea.vmem %s1, %s288
      %p290 = pneg %p66
      %p291 = pneg %p63
      %p292 = pneg %p87
      %p293 = pneg %p84
      %p294 = pneg %p108
      %p295 = pneg %p105
      %p296 = pneg %p129
      %p297 = pneg %p126
      %p298 = pneg %p150
      %p299 = pneg %p147
      %p300 = pneg %p171
      %p301 = pneg %p168
      %p302 = pneg %p192
      %p303 = pneg %p189
      %p304 = pneg %p218
      %p305 = pneg %p215
      %p306 = scmp.lt.s32.totalorder %s19, 7
      %s307 = scalar_select %p306, %s19, 7
      %s308 = smul.addr %s307, 2
      %s309 = smul.addr %s308, 8
      %s310 = scalar_lea.vmem %s8, %s309
      %p311 = scmp.lt.s32.totalorder %s19, 7
      %s312 = scalar_select %p311, %s19, 7
      %s313 = smul.addr %s312, 2
      %s314 = smul.addr %s313, 8
      %s315 = scalar_lea.vmem %s0, %s314
      %p316 = scmp.lt.s32.totalorder %s19, 7
      %s317 = scalar_select %p316, %s19, 7
      %s318 = smul.addr %s317, 8
      %s319 = smul.addr %s318, 8
      %s320 = scalar_lea.vmem %s1, %s319
      %p321 = scmp.lt.s32.totalorder %s19, 7
      %s322 = scalar_select %p321, %s19, 7
      %s323 = smul.addr %s322, 2
      %s324 = smul.addr %s323, 8
      %s325 = scalar_lea.vmem %s8, %s324
      %v326 = vld [vmem:[%s315] sm:$0xff]
      %v327 = vld [vmem:[%s315 + $0x8] sm:$0xff]
      %v328 = vld [vmem:[%s320] sm:$0xff]
      %v329 = vld [vmem:[%s320 + $0x8] sm:$0xff]
      %v330 = vld [vmem:[%s320 + $0x10] sm:$0xff]
      %v331 = vld [vmem:[%s320 + $0x18] sm:$0xff]
      %v332 = vld [vmem:[%s320 + $0x20] sm:$0xff]
      %v333 = vld [vmem:[%s320 + $0x28] sm:$0xff]
      %v334 = vld [vmem:[%s320 + $0x30] sm:$0xff]
      %v335 = vld [vmem:[%s320 + $0x38] sm:$0xff]
      %v336 = vld [vmem:[%s3] sm:$0xff]
      %v337 = vld [vmem:[%s3 + $0x8] sm:$0xff]
      %v338 = vld [vmem:[%s3 + $0x10] sm:$0xff]
      %v339 = vld [vmem:[%s3 + $0x18] sm:$0xff]
      %v340 = vld [vmem:[%s4] sm:$0x1]
      %v342 = vlaneseq
      %v343 = vshrl.u32 %v342, 7
      %v344 = vsub.s32 0, %v343
      %v345 = vrot.slane %v340, %v344
      %vm347 = vcmask 261120
      %v349 = vsel %vm347, %v326, 0
      %v352 = vsel %vm347, %v327, 0
      %354 = vmatprep.subr.mxu0 0.0
      %355 = vmatpush1.msra.mxu0 %v336
      %356 = vmatprep.subr.mxu0 0.0
      %357 = vmatpush1.msra.mxu0 %v337
      %358 = vmatprep.subr.mxu0 0.0
      %359 = vmatpush1.msra.mxu0 %v338
      %360 = vmatprep.subr.mxu0 0.0
      %361 = vmatpush1.msra.mxu0 %v339
      %362 = vmatprep.subr.mxu0 0.0
      %363 = vmatpush1.msra.mxu0 0.0
      %364 = vmatprep.subr.mxu0 0.0
      %365 = vmatpush1.msra.mxu0 0.0
      %366 = vmatprep.subr.mxu0 0.0
      %367 = vmatpush1.msra.mxu0 0.0
      %368 = vmatprep.subr.mxu0 0.0
      %369 = vmatpush1.msra.mxu0 0.0
      %370 = vmatprep.subr.mxu0 0.0
      %371 = vmatpush1.msra.mxu0 0.0
      %372 = vmatprep.subr.mxu0 0.0
      %373 = vmatpush1.msra.mxu0 0.0
      %374 = vmatprep.subr.mxu0 0.0
      %375 = vmatpush1.msra.mxu0 0.0
      %376 = vmatprep.subr.mxu0 0.0
      %377 = vmatpush1.msra.mxu0 0.0
      %378 = vmatprep.subr.mxu0 0.0
      %379 = vmatpush1.msra.mxu0 0.0
      %380 = vmatprep.subr.mxu0 0.0
      %381 = vmatpush1.msra.mxu0 0.0
      %382 = vmatprep.subr.mxu0 0.0
      %383 = vmatpush1.msra.mxu0 0.0
      %384 = vmatprep.subr.mxu0 0.0
      %385 = vmatpush1.msra.mxu0 0.0
      %386 = vmatprep.subr.mxu0 0.0
      %387 = vmatpush1.msra.mxu0 0.0
      %388 = vmatprep.subr.mxu0 0.0
      %389 = vmatpush1.msra.mxu0 0.0
      %390 = vmatprep.subr.mxu0 0.0
      %391 = vmatpush1.msra.mxu0 0.0
      %392 = vmatprep.subr.mxu0 0.0
      %393 = vmatpush1.msra.mxu0 0.0
      %394 = vmatprep.subr.mxu0 0.0
      %395 = vmatpush1.msra.mxu0 0.0
      %396 = vmatprep.subr.mxu0 0.0
      %397 = vmatpush1.msra.mxu0 0.0
      %398 = vmatprep.subr.mxu0 0.0
      %399 = vmatpush1.msra.mxu0 0.0
      %400 = vmatprep.subr.mxu0 0.0
      %401 = vmatpush1.msra.mxu0 0.0
      %402 = vmatprep.subr.mxu0 0.0
      %403 = vmatpush1.msra.mxu0 0.0
      %404 = vmatprep.subr.mxu0 0.0
      %405 = vmatpush1.msra.mxu0 0.0
      %406 = vmatprep.subr.mxu0 0.0
      %407 = vmatpush1.msra.mxu0 0.0
      %408 = vmatprep.subr.mxu0 0.0
      %409 = vmatpush1.msra.mxu0 0.0
      %410 = vmatprep.subr.mxu0 0.0
      %411 = vmatpush1.msra.mxu0 0.0
      %412 = vmatprep.subr.mxu0 0.0
      %413 = vmatpush1.msra.mxu0 0.0
      %414 = vmatprep.subr.mxu0 0.0
      %415 = vmatpush1.msra.mxu0 0.0
      %416 = vmatprep.subr.mxu0 0.0
      %417 = vmatpush1.msra.mxu0 0.0
      %418 = vmatprep.mubr.f32.mxu0 0.0
      %419 = vmatmul.mubr.f32.gmra.mrb[0].mxu0 %v349
      %v420 = vpop.f32.mrb[0].mxu0
      %v421 = vadd.f32 %v345, %v420
      %v422 = vpop.f32.mrb[0].mxu0
      %423 = vmatprep.mubr.f32.mxu0 0.0
      %424 = vmatmul.mubr.f32.gmra.mrb[0].mxu0 %v352
      %v425 = vpop.f32.mrb[0].mxu0
      %v426 = vadd.f32 %v345, %v425
      %v427 = vpop.f32.mrb[0].mxu0
      %428 = vdwg.mxu0
      %vm429 = vcmask 130048
      %v431 = vsel %vm429, %v328, 0
      %v434 = vsel %vm429, %v329, 0
      %v437 = vsel %vm429, %v330, 0
      %v440 = vsel %vm429, %v331, 0
      %v443 = vsel %vm429, %v332, 0
      %v446 = vsel %vm429, %v333, 0
      %v449 = vsel %vm429, %v334, 0
      %v452 = vsel %vm429, %v335, 0
      %454 = vmatprep.subr.mxu0 0.0
      %455 = vmatpush1.msra.mxu0 %v326
      %456 = vmatprep.subr.mxu0 0.0
      %457 = vmatpush1.msra.mxu0 %v327
      %458 = vmatprep.subr.mxu0 0.0
      %459 = vmatpush1.msra.mxu0 0.0
      %460 = vmatprep.subr.mxu0 0.0
      %461 = vmatpush1.msra.mxu0 0.0
      %462 = vmatprep.subr.mxu0 0.0
      %463 = vmatpush1.msra.mxu0 0.0
      %464 = vmatprep.subr.mxu0 0.0
      %465 = vmatpush1.msra.mxu0 0.0
      %466 = vmatprep.subr.mxu0 0.0
      %467 = vmatpush1.msra.mxu0 0.0
      %468 = vmatprep.subr.mxu0 0.0
      %469 = vmatpush1.msra.mxu0 0.0
      %470 = vmatprep.subr.mxu0 0.0
      %471 = vmatpush1.msra.mxu0 0.0
      %472 = vmatprep.subr.mxu0 0.0
      %473 = vmatpush1.msra.mxu0 0.0
      %474 = vmatprep.subr.mxu0 0.0
      %475 = vmatpush1.msra.mxu0 0.0
      %476 = vmatprep.subr.mxu0 0.0
      %477 = vmatpush1.msra.mxu0 0.0
      %478 = vmatprep.subr.mxu0 0.0
      %479 = vmatpush1.msra.mxu0 0.0
      %480 = vmatprep.subr.mxu0 0.0
      %481 = vmatpush1.msra.mxu0 0.0
      %482 = vmatprep.subr.mxu0 0.0
      %483 = vmatpush1.msra.mxu0 0.0
      %484 = vmatprep.subr.mxu0 0.0
      %485 = vmatpush1.msra.mxu0 0.0
      %486 = vmatprep.subr.mxu0 0.0
      %487 = vmatpush1.msra.mxu0 0.0
      %488 = vmatprep.subr.mxu0 0.0
      %489 = vmatpush1.msra.mxu0 0.0
      %490 = vmatprep.subr.mxu0 0.0
      %491 = vmatpush1.msra.mxu0 0.0
      %492 = vmatprep.subr.mxu0 0.0
      %493 = vmatpush1.msra.mxu0 0.0
      %494 = vmatprep.subr.mxu0 0.0
      %495 = vmatpush1.msra.mxu0 0.0
      %496 = vmatprep.subr.mxu0 0.0
      %497 = vmatpush1.msra.mxu0 0.0
      %498 = vmatprep.subr.mxu0 0.0
      %499 = vmatpush1.msra.mxu0 0.0
      %500 = vmatprep.subr.mxu0 0.0
      %501 = vmatpush1.msra.mxu0 0.0
      %502 = vmatprep.subr.mxu0 0.0
      %503 = vmatpush1.msra.mxu0 0.0
      %504 = vmatprep.subr.mxu0 0.0
      %505 = vmatpush1.msra.mxu0 0.0
      %506 = vmatprep.subr.mxu0 0.0
      %507 = vmatpush1.msra.mxu0 0.0
      %508 = vmatprep.subr.mxu0 0.0
      %509 = vmatpush1.msra.mxu0 0.0
      %510 = vmatprep.subr.mxu0 0.0
      %511 = vmatpush1.msra.mxu0 0.0
      %512 = vmatprep.subr.mxu0 0.0
      %513 = vmatpush1.msra.mxu0 0.0
      %514 = vmatprep.subr.mxu0 0.0
      %515 = vmatpush1.msra.mxu0 0.0
      %516 = vmatprep.subr.mxu0 0.0
      %517 = vmatpush1.msra.mxu0 0.0
      %518 = vmatprep.mubr.f32.mxu0 0.0
      %519 = vmatmul.mubr.f32.gmra.mrb[0].mxu0 %v431
      %v520 = vpop.f32.mrb[0].mxu0
      %v521 = vadd.f32 0.0, %v520
      %v522 = vpop.f32.mrb[0].mxu0
      %523 = vmatprep.mubr.f32.mxu0 0.0
      %524 = vmatmul.mubr.f32.gmra.mrb[0].mxu0 %v434
      %v525 = vpop.f32.mrb[0].mxu0
      %v526 = vadd.f32 0.0, %v525
      %v527 = vpop.f32.mrb[0].mxu0
      %528 = vmatprep.mubr.f32.mxu0 0.0
      %529 = vmatmul.mubr.f32.gmra.mrb[0].mxu0 %v437
      %v530 = vpop.f32.mrb[0].mxu0
      %v531 = vadd.f32 0.0, %v530
      %v532 = vpop.f32.mrb[0].mxu0
      %533 = vmatprep.mubr.f32.mxu0 0.0
      %534 = vmatmul.mubr.f32.gmra.mrb[0].mxu0 %v440
      %v535 = vpop.f32.mrb[0].mxu0
      %v536 = vadd.f32 0.0, %v535
      %v537 = vpop.f32.mrb[0].mxu0
      %538 = vmatprep.mubr.f32.mxu0 0.0
      %539 = vmatmul.mubr.f32.gmra.mrb[0].mxu0 %v443
      %v540 = vpop.f32.mrb[0].mxu0
      %v541 = vadd.f32 0.0, %v540
      %v542 = vpop.f32.mrb[0].mxu0
      %543 = vmatprep.mubr.f32.mxu0 0.0
      %544 = vmatmul.mubr.f32.gmra.mrb[0].mxu0 %v446
      %v545 = vpop.f32.mrb[0].mxu0
      %v546 = vadd.f32 0.0, %v545
      %v547 = vpop.f32.mrb[0].mxu0
      %548 = vmatprep.mubr.f32.mxu0 0.0
      %549 = vmatmul.mubr.f32.gmra.mrb[0].mxu0 %v449
      %v550 = vpop.f32.mrb[0].mxu0
      %v551 = vadd.f32 0.0, %v550
      %v552 = vpop.f32.mrb[0].mxu0
      %553 = vmatprep.mubr.f32.mxu0 0.0
      %554 = vmatmul.mubr.f32.gmra.mrb[0].mxu0 %v452
      %v555 = vpop.f32.mrb[0].mxu0
      %v556 = vadd.f32 0.0, %v555
      %v557 = vpop.f32.mrb[0].mxu0
      %558 = vdwg.mxu0
      %v559 = vld [vmem:[%s2] sm:$0xff]
      %v560 = vld [vmem:[%s2 + $0x8] sm:$0xff]
      %v561 = vld [vmem:[%s2 + $0x10] sm:$0xff]
      %v562 = vld [vmem:[%s2 + $0x18] sm:$0xff]
      %v564 = vsel %vm347, %v521, 0
      %v567 = vsel %vm347, %v526, 0
      %569 = vmatprep.subr.mxu0 0.0
      %570 = vmatpush1.msra.mxu0 %v559
      %571 = vmatprep.subr.mxu0 0.0
      %572 = vmatpush1.msra.mxu0 %v560
      %573 = vmatprep.subr.mxu0 0.0
      %574 = vmatpush1.msra.mxu0 %v561
      %575 = vmatprep.subr.mxu0 0.0
      %576 = vmatpush1.msra.mxu0 %v562
      %577 = vmatprep.subr.mxu0 0.0
      %578 = vmatpush1.msra.mxu0 0.0
      %579 = vmatprep.subr.mxu0 0.0
      %580 = vmatpush1.msra.mxu0 0.0
      %581 = vmatprep.subr.mxu0 0.0
      %582 = vmatpush1.msra.mxu0 0.0
      %583 = vmatprep.subr.mxu0 0.0
      %584 = vmatpush1.msra.mxu0 0.0
      %585 = vmatprep.subr.mxu0 0.0
      %586 = vmatpush1.msra.mxu0 0.0
      %587 = vmatprep.subr.mxu0 0.0
      %588 = vmatpush1.msra.mxu0 0.0
      %589 = vmatprep.subr.mxu0 0.0
      %590 = vmatpush1.msra.mxu0 0.0
      %591 = vmatprep.subr.mxu0 0.0
      %592 = vmatpush1.msra.mxu0 0.0
      %593 = vmatprep.subr.mxu0 0.0
      %594 = vmatpush1.msra.mxu0 0.0
      %595 = vmatprep.subr.mxu0 0.0
      %596 = vmatpush1.msra.mxu0 0.0
      %597 = vmatprep.subr.mxu0 0.0
      %598 = vmatpush1.msra.mxu0 0.0
      %599 = vmatprep.subr.mxu0 0.0
      %600 = vmatpush1.msra.mxu0 0.0
      %601 = vmatprep.subr.mxu0 0.0
      %602 = vmatpush1.msra.mxu0 0.0
      %603 = vmatprep.subr.mxu0 0.0
      %604 = vmatpush1.msra.mxu0 0.0
      %605 = vmatprep.subr.mxu0 0.0
      %606 = vmatpush1.msra.mxu0 0.0
      %607 = vmatprep.subr.mxu0 0.0
      %608 = vmatpush1.msra.mxu0 0.0
      %609 = vmatprep.subr.mxu0 0.0
      %610 = vmatpush1.msra.mxu0 0.0
      %611 = vmatprep.subr.mxu0 0.0
      %612 = vmatpush1.msra.mxu0 0.0
      %613 = vmatprep.subr.mxu0 0.0
      %614 = vmatpush1.msra.mxu0 0.0
      %615 = vmatprep.subr.mxu0 0.0
      %616 = vmatpush1.msra.mxu0 0.0
      %617 = vmatprep.subr.mxu0 0.0
      %618 = vmatpush1.msra.mxu0 0.0
      %619 = vmatprep.subr.mxu0 0.0
      %620 = vmatpush1.msra.mxu0 0.0
      %621 = vmatprep.subr.mxu0 0.0
      %622 = vmatpush1.msra.mxu0 0.0
      %623 = vmatprep.subr.mxu0 0.0
      %624 = vmatpush1.msra.mxu0 0.0
      %625 = vmatprep.subr.mxu0 0.0
      %626 = vmatpush1.msra.mxu0 0.0
      %627 = vmatprep.subr.mxu0 0.0
      %628 = vmatpush1.msra.mxu0 0.0
      %629 = vmatprep.subr.mxu0 0.0
      %630 = vmatpush1.msra.mxu0 0.0
      %631 = vmatprep.subr.mxu0 0.0
      %632 = vmatpush1.msra.mxu0 0.0
      %633 = vmatprep.mubr.f32.mxu0 0.0
      %634 = vmatmul.mubr.f32.gmra.mrb[0].mxu0 %v564
      %v635 = vpop.f32.mrb[0].mxu0
      %v636 = vadd.f32 0.0, %v635
      %v637 = vpop.f32.mrb[0].mxu0
      %638 = vmatprep.mubr.f32.mxu0 0.0
      %639 = vmatmul.mubr.f32.gmra.mrb[0].mxu0 %v567
      %v640 = vpop.f32.mrb[0].mxu0
      %v641 = vadd.f32 0.0, %v640
      %v642 = vpop.f32.mrb[0].mxu0
      %643 = vdwg.mxu0
      %v644 = vadd.f32 %v421, %v636
      %v645 = vadd.f32 %v426, %v641
      %s646 = scalar_lea.vmem %s2, 32
      %v647 = vld [vmem:[%s646] sm:$0xff]
      %v648 = vld [vmem:[%s646 + $0x8] sm:$0xff]
      %v649 = vld [vmem:[%s646 + $0x10] sm:$0xff]
      %v650 = vld [vmem:[%s646 + $0x18] sm:$0xff]
      %v652 = vsel %vm347, %v531, 0
      %v655 = vsel %vm347, %v536, 0
      %657 = vmatprep.subr.mxu0 0.0
      %658 = vmatpush1.msra.mxu0 %v647
      %659 = vmatprep.subr.mxu0 0.0
      %660 = vmatpush1.msra.mxu0 %v648
      %661 = vmatprep.subr.mxu0 0.0
      %662 = vmatpush1.msra.mxu0 %v649
      %663 = vmatprep.subr.mxu0 0.0
      %664 = vmatpush1.msra.mxu0 %v650
      %665 = vmatprep.subr.mxu0 0.0
      %666 = vmatpush1.msra.mxu0 0.0
      %667 = vmatprep.subr.mxu0 0.0
      %668 = vmatpush1.msra.mxu0 0.0
      %669 = vmatprep.subr.mxu0 0.0
      %670 = vmatpush1.msra.mxu0 0.0
      %671 = vmatprep.subr.mxu0 0.0
      %672 = vmatpush1.msra.mxu0 0.0
      %673 = vmatprep.subr.mxu0 0.0
      %674 = vmatpush1.msra.mxu0 0.0
      %675 = vmatprep.subr.mxu0 0.0
      %676 = vmatpush1.msra.mxu0 0.0
      %677 = vmatprep.subr.mxu0 0.0
      %678 = vmatpush1.msra.mxu0 0.0
      %679 = vmatprep.subr.mxu0 0.0
      %680 = vmatpush1.msra.mxu0 0.0
      %681 = vmatprep.subr.mxu0 0.0
      %682 = vmatpush1.msra.mxu0 0.0
      %683 = vmatprep.subr.mxu0 0.0
      %684 = vmatpush1.msra.mxu0 0.0
      %685 = vmatprep.subr.mxu0 0.0
      %686 = vmatpush1.msra.mxu0 0.0
      %687 = vmatprep.subr.mxu0 0.0
      %688 = vmatpush1.msra.mxu0 0.0
      %689 = vmatprep.subr.mxu0 0.0
      %690 = vmatpush1.msra.mxu0 0.0
      %691 = vmatprep.subr.mxu0 0.0
      %692 = vmatpush1.msra.mxu0 0.0
      %693 = vmatprep.subr.mxu0 0.0
      %694 = vmatpush1.msra.mxu0 0.0
      %695 = vmatprep.subr.mxu0 0.0
      %696 = vmatpush1.msra.mxu0 0.0
      %697 = vmatprep.subr.mxu0 0.0
      %698 = vmatpush1.msra.mxu0 0.0
      %699 = vmatprep.subr.mxu0 0.0
      %700 = vmatpush1.msra.mxu0 0.0
      %701 = vmatprep.subr.mxu0 0.0
      %702 = vmatpush1.msra.mxu0 0.0
      %703 = vmatprep.subr.mxu0 0.0
      %704 = vmatpush1.msra.mxu0 0.0
      %705 = vmatprep.subr.mxu0 0.0
      %706 = vmatpush1.msra.mxu0 0.0
      %707 = vmatprep.subr.mxu0 0.0
      %708 = vmatpush1.msra.mxu0 0.0
      %709 = vmatprep.subr.mxu0 0.0
      %710 = vmatpush1.msra.mxu0 0.0
      %711 = vmatprep.subr.mxu0 0.0
      %712 = vmatpush1.msra.mxu0 0.0
      %713 = vmatprep.subr.mxu0 0.0
      %714 = vmatpush1.msra.mxu0 0.0
      %715 = vmatprep.subr.mxu0 0.0
      %716 = vmatpush1.msra.mxu0 0.0
      %717 = vmatprep.subr.mxu0 0.0
      %718 = vmatpush1.msra.mxu0 0.0
      %719 = vmatprep.subr.mxu0 0.0
      %720 = vmatpush1.msra.mxu0 0.0
      %721 = vmatprep.mubr.f32.mxu0 0.0
      %722 = vmatmul.mubr.f32.gmra.mrb[0].mxu0 %v652
      %v723 = vpop.f32.mrb[0].mxu0
      %v724 = vadd.f32 0.0, %v723
      %v725 = vpop.f32.mrb[0].mxu0
      %726 = vmatprep.mubr.f32.mxu0 0.0
      %727 = vmatmul.mubr.f32.gmra.mrb[0].mxu0 %v655
      %v728 = vpop.f32.mrb[0].mxu0
      %v729 = vadd.f32 0.0, %v728
      %v730 = vpop.f32.mrb[0].mxu0
      %731 = vdwg.mxu0
      %v732 = vadd.f32 %v644, %v724
      %v733 = vadd.f32 %v645, %v729
      %s734 = scalar_lea.vmem %s2, 64
      %v735 = vld [vmem:[%s734] sm:$0xff]
      %v736 = vld [vmem:[%s734 + $0x8] sm:$0xff]
      %v737 = vld [vmem:[%s734 + $0x10] sm:$0xff]
      %v738 = vld [vmem:[%s734 + $0x18] sm:$0xff]
      %v740 = vsel %vm347, %v541, 0
      %v743 = vsel %vm347, %v546, 0
      %745 = vmatprep.subr.mxu0 0.0
      %746 = vmatpush1.msra.mxu0 %v735
      %747 = vmatprep.subr.mxu0 0.0
      %748 = vmatpush1.msra.mxu0 %v736
      %749 = vmatprep.subr.mxu0 0.0
      %750 = vmatpush1.msra.mxu0 %v737
      %751 = vmatprep.subr.mxu0 0.0
      %752 = vmatpush1.msra.mxu0 %v738
      %753 = vmatprep.subr.mxu0 0.0
      %754 = vmatpush1.msra.mxu0 0.0
      %755 = vmatprep.subr.mxu0 0.0
      %756 = vmatpush1.msra.mxu0 0.0
      %757 = vmatprep.subr.mxu0 0.0
      %758 = vmatpush1.msra.mxu0 0.0
      %759 = vmatprep.subr.mxu0 0.0
      %760 = vmatpush1.msra.mxu0 0.0
      %761 = vmatprep.subr.mxu0 0.0
      %762 = vmatpush1.msra.mxu0 0.0
      %763 = vmatprep.subr.mxu0 0.0
      %764 = vmatpush1.msra.mxu0 0.0
      %765 = vmatprep.subr.mxu0 0.0
      %766 = vmatpush1.msra.mxu0 0.0
      %767 = vmatprep.subr.mxu0 0.0
      %768 = vmatpush1.msra.mxu0 0.0
      %769 = vmatprep.subr.mxu0 0.0
      %770 = vmatpush1.msra.mxu0 0.0
      %771 = vmatprep.subr.mxu0 0.0
      %772 = vmatpush1.msra.mxu0 0.0
      %773 = vmatprep.subr.mxu0 0.0
      %774 = vmatpush1.msra.mxu0 0.0
      %775 = vmatprep.subr.mxu0 0.0
      %776 = vmatpush1.msra.mxu0 0.0
      %777 = vmatprep.subr.mxu0 0.0
      %778 = vmatpush1.msra.mxu0 0.0
      %779 = vmatprep.subr.mxu0 0.0
      %780 = vmatpush1.msra.mxu0 0.0
      %781 = vmatprep.subr.mxu0 0.0
      %782 = vmatpush1.msra.mxu0 0.0
      %783 = vmatprep.subr.mxu0 0.0
      %784 = vmatpush1.msra.mxu0 0.0
      %785 = vmatprep.subr.mxu0 0.0
      %786 = vmatpush1.msra.mxu0 0.0
      %787 = vmatprep.subr.mxu0 0.0
      %788 = vmatpush1.msra.mxu0 0.0
      %789 = vmatprep.subr.mxu0 0.0
      %790 = vmatpush1.msra.mxu0 0.0
      %791 = vmatprep.subr.mxu0 0.0
      %792 = vmatpush1.msra.mxu0 0.0
      %793 = vmatprep.subr.mxu0 0.0
      %794 = vmatpush1.msra.mxu0 0.0
      %795 = vmatprep.subr.mxu0 0.0
      %796 = vmatpush1.msra.mxu0 0.0
      %797 = vmatprep.subr.mxu0 0.0
      %798 = vmatpush1.msra.mxu0 0.0
      %799 = vmatprep.subr.mxu0 0.0
      %800 = vmatpush1.msra.mxu0 0.0
      %801 = vmatprep.subr.mxu0 0.0
      %802 = vmatpush1.msra.mxu0 0.0
      %803 = vmatprep.subr.mxu0 0.0
      %804 = vmatpush1.msra.mxu0 0.0
      %805 = vmatprep.subr.mxu0 0.0
      %806 = vmatpush1.msra.mxu0 0.0
      %807 = vmatprep.subr.mxu0 0.0
      %808 = vmatpush1.msra.mxu0 0.0
      %809 = vmatprep.mubr.f32.mxu0 0.0
      %810 = vmatmul.mubr.f32.gmra.mrb[0].mxu0 %v740
      %v811 = vpop.f32.mrb[0].mxu0
      %v812 = vadd.f32 0.0, %v811
      %v813 = vpop.f32.mrb[0].mxu0
      %814 = vmatprep.mubr.f32.mxu0 0.0
      %815 = vmatmul.mubr.f32.gmra.mrb[0].mxu0 %v743
      %v816 = vpop.f32.mrb[0].mxu0
      %v817 = vadd.f32 0.0, %v816
      %v818 = vpop.f32.mrb[0].mxu0
      %819 = vdwg.mxu0
      %v820 = vadd.f32 %v732, %v812
      %v821 = vadd.f32 %v733, %v817
      %s822 = scalar_lea.vmem %s2, 96
      %v823 = vld [vmem:[%s822] sm:$0xff]
      %v824 = vld [vmem:[%s822 + $0x8] sm:$0xff]
      %v825 = vld [vmem:[%s822 + $0x10] sm:$0xff]
      %v826 = vld [vmem:[%s822 + $0x18] sm:$0xff]
      %v828 = vsel %vm347, %v551, 0
      %v831 = vsel %vm347, %v556, 0
      %833 = vmatprep.subr.mxu0 0.0
      %834 = vmatpush1.msra.mxu0 %v823
      %835 = vmatprep.subr.mxu0 0.0
      %836 = vmatpush1.msra.mxu0 %v824
      %837 = vmatprep.subr.mxu0 0.0
      %838 = vmatpush1.msra.mxu0 %v825
      %839 = vmatprep.subr.mxu0 0.0
      %840 = vmatpush1.msra.mxu0 %v826
      %841 = vmatprep.subr.mxu0 0.0
      %842 = vmatpush1.msra.mxu0 0.0
      %843 = vmatprep.subr.mxu0 0.0
      %844 = vmatpush1.msra.mxu0 0.0
      %845 = vmatprep.subr.mxu0 0.0
      %846 = vmatpush1.msra.mxu0 0.0
      %847 = vmatprep.subr.mxu0 0.0
      %848 = vmatpush1.msra.mxu0 0.0
      %849 = vmatprep.subr.mxu0 0.0
      %850 = vmatpush1.msra.mxu0 0.0
      %851 = vmatprep.subr.mxu0 0.0
      %852 = vmatpush1.msra.mxu0 0.0
      %853 = vmatprep.subr.mxu0 0.0
      %854 = vmatpush1.msra.mxu0 0.0
      %855 = vmatprep.subr.mxu0 0.0
      %856 = vmatpush1.msra.mxu0 0.0
      %857 = vmatprep.subr.mxu0 0.0
      %858 = vmatpush1.msra.mxu0 0.0
      %859 = vmatprep.subr.mxu0 0.0
      %860 = vmatpush1.msra.mxu0 0.0
      %861 = vmatprep.subr.mxu0 0.0
      %862 = vmatpush1.msra.mxu0 0.0
      %863 = vmatprep.subr.mxu0 0.0
      %864 = vmatpush1.msra.mxu0 0.0
      %865 = vmatprep.subr.mxu0 0.0
      %866 = vmatpush1.msra.mxu0 0.0
      %867 = vmatprep.subr.mxu0 0.0
      %868 = vmatpush1.msra.mxu0 0.0
      %869 = vmatprep.subr.mxu0 0.0
      %870 = vmatpush1.msra.mxu0 0.0
      %871 = vmatprep.subr.mxu0 0.0
      %872 = vmatpush1.msra.mxu0 0.0
      %873 = vmatprep.subr.mxu0 0.0
      %874 = vmatpush1.msra.mxu0 0.0
      %875 = vmatprep.subr.mxu0 0.0
      %876 = vmatpush1.msra.mxu0 0.0
      %877 = vmatprep.subr.mxu0 0.0
      %878 = vmatpush1.msra.mxu0 0.0
      %879 = vmatprep.subr.mxu0 0.0
      %880 = vmatpush1.msra.mxu0 0.0
      %881 = vmatprep.subr.mxu0 0.0
      %882 = vmatpush1.msra.mxu0 0.0
      %883 = vmatprep.subr.mxu0 0.0
      %884 = vmatpush1.msra.mxu0 0.0
      %885 = vmatprep.subr.mxu0 0.0
      %886 = vmatpush1.msra.mxu0 0.0
      %887 = vmatprep.subr.mxu0 0.0
      %888 = vmatpush1.msra.mxu0 0.0
      %889 = vmatprep.subr.mxu0 0.0
      %890 = vmatpush1.msra.mxu0 0.0
      %891 = vmatprep.subr.mxu0 0.0
      %892 = vmatpush1.msra.mxu0 0.0
      %893 = vmatprep.subr.mxu0 0.0
      %894 = vmatpush1.msra.mxu0 0.0
      %895 = vmatprep.subr.mxu0 0.0
      %896 = vmatpush1.msra.mxu0 0.0
      %897 = vmatprep.mubr.f32.mxu0 0.0
      %898 = vmatmul.mubr.f32.gmra.mrb[0].mxu0 %v828
      %v899 = vpop.f32.mrb[0].mxu0
      %v900 = vadd.f32 0.0, %v899
      %v901 = vpop.f32.mrb[0].mxu0
      %902 = vmatprep.mubr.f32.mxu0 0.0
      %903 = vmatmul.mubr.f32.gmra.mrb[0].mxu0 %v831
      %v904 = vpop.f32.mrb[0].mxu0
      %v905 = vadd.f32 0.0, %v904
      %v906 = vpop.f32.mrb[0].mxu0
      %907 = vdwg.mxu0
      %v908 = vadd.f32 %v820, %v900
      %v909 = vadd.f32 %v821, %v905
      %v910 = vmax.f32 %v908, 0.0
      %v911 = vmax.f32 %v909, 0.0
      %v912 = vld [vmem:[%s6] sm:$0xff]
      %v913 = vld [vmem:[%s6 + $0x8] sm:$0xff]
      %v914 = vld [vmem:[%s6 + $0x10] sm:$0xff]
      %v915 = vld [vmem:[%s6 + $0x18] sm:$0xff]
      %v916 = vld [vmem:[%s7] sm:$0x1]
      %v918 = vlaneseq
      %v919 = vshrl.u32 %v918, 7
      %v920 = vsub.s32 0, %v919
      %v921 = vrot.slane %v916, %v920
      %v924 = vsel %vm347, %v910, 0
      %v927 = vsel %vm347, %v911, 0
      %929 = vmatprep.subr.mxu0 0.0
      %930 = vmatpush1.msra.mxu0 %v912
      %931 = vmatprep.subr.mxu0 0.0
      %932 = vmatpush1.msra.mxu0 %v913
      %933 = vmatprep.subr.mxu0 0.0
      %934 = vmatpush1.msra.mxu0 %v914
      %935 = vmatprep.subr.mxu0 0.0
      %936 = vmatpush1.msra.mxu0 %v915
      %937 = vmatprep.subr.mxu0 0.0
      %938 = vmatpush1.msra.mxu0 0.0
      %939 = vmatprep.subr.mxu0 0.0
      %940 = vmatpush1.msra.mxu0 0.0
      %941 = vmatprep.subr.mxu0 0.0
      %942 = vmatpush1.msra.mxu0 0.0
      %943 = vmatprep.subr.mxu0 0.0
      %944 = vmatpush1.msra.mxu0 0.0
      %945 = vmatprep.subr.mxu0 0.0
      %946 = vmatpush1.msra.mxu0 0.0
      %947 = vmatprep.subr.mxu0 0.0
      %948 = vmatpush1.msra.mxu0 0.0
      %949 = vmatprep.subr.mxu0 0.0
      %950 = vmatpush1.msra.mxu0 0.0
      %951 = vmatprep.subr.mxu0 0.0
      %952 = vmatpush1.msra.mxu0 0.0
      %953 = vmatprep.subr.mxu0 0.0
      %954 = vmatpush1.msra.mxu0 0.0
      %955 = vmatprep.subr.mxu0 0.0
      %956 = vmatpush1.msra.mxu0 0.0
      %957 = vmatprep.subr.mxu0 0.0
      %958 = vmatpush1.msra.mxu0 0.0
      %959 = vmatprep.subr.mxu0 0.0
      %960 = vmatpush1.msra.mxu0 0.0
      %961 = vmatprep.subr.mxu0 0.0
      %962 = vmatpush1.msra.mxu0 0.0
      %963 = vmatprep.subr.mxu0 0.0
      %964 = vmatpush1.msra.mxu0 0.0
      %965 = vmatprep.subr.mxu0 0.0
      %966 = vmatpush1.msra.mxu0 0.0
      %967 = vmatprep.subr.mxu0 0.0
      %968 = vmatpush1.msra.mxu0 0.0
      %969 = vmatprep.subr.mxu0 0.0
      %970 = vmatpush1.msra.mxu0 0.0
      %971 = vmatprep.subr.mxu0 0.0
      %972 = vmatpush1.msra.mxu0 0.0
      %973 = vmatprep.subr.mxu0 0.0
      %974 = vmatpush1.msra.mxu0 0.0
      %975 = vmatprep.subr.mxu0 0.0
      %976 = vmatpush1.msra.mxu0 0.0
      %977 = vmatprep.subr.mxu0 0.0
      %978 = vmatpush1.msra.mxu0 0.0
      %979 = vmatprep.subr.mxu0 0.0
      %980 = vmatpush1.msra.mxu0 0.0
      %981 = vmatprep.subr.mxu0 0.0
      %982 = vmatpush1.msra.mxu0 0.0
      %983 = vmatprep.subr.mxu0 0.0
      %984 = vmatpush1.msra.mxu0 0.0
      %985 = vmatprep.subr.mxu0 0.0
      %986 = vmatpush1.msra.mxu0 0.0
      %987 = vmatprep.subr.mxu0 0.0
      %988 = vmatpush1.msra.mxu0 0.0
      %989 = vmatprep.subr.mxu0 0.0
      %990 = vmatpush1.msra.mxu0 0.0
      %991 = vmatprep.subr.mxu0 0.0
      %992 = vmatpush1.msra.mxu0 0.0
      %993 = vmatprep.mubr.f32.mxu0 0.0
      %994 = vmatmul.mubr.f32.gmra.mrb[0].mxu0 %v924
      %v995 = vpop.f32.mrb[0].mxu0
      %v996 = vadd.f32 %v921, %v995
      %v997 = vpop.f32.mrb[0].mxu0
      %998 = vmatprep.mubr.f32.mxu0 0.0
      %999 = vmatmul.mubr.f32.gmra.mrb[0].mxu0 %v927
      %v1000 = vpop.f32.mrb[0].mxu0
      %v1001 = vadd.f32 %v921, %v1000
      %v1002 = vpop.f32.mrb[0].mxu0
      %1003 = vdwg.mxu0
      %1004 = vmatprep.subr.mxu0 0.0
      %1005 = vmatpush1.msra.mxu0 %v910
      %1006 = vmatprep.subr.mxu0 0.0
      %1007 = vmatpush1.msra.mxu0 %v911
      %1008 = vmatprep.subr.mxu0 0.0
      %1009 = vmatpush1.msra.mxu0 0.0
      %1010 = vmatprep.subr.mxu0 0.0
      %1011 = vmatpush1.msra.mxu0 0.0
      %1012 = vmatprep.subr.mxu0 0.0
      %1013 = vmatpush1.msra.mxu0 0.0
      %1014 = vmatprep.subr.mxu0 0.0
      %1015 = vmatpush1.msra.mxu0 0.0
      %1016 = vmatprep.subr.mxu0 0.0
      %1017 = vmatpush1.msra.mxu0 0.0
      %1018 = vmatprep.subr.mxu0 0.0
      %1019 = vmatpush1.msra.mxu0 0.0
      %1020 = vmatprep.subr.mxu0 0.0
      %1021 = vmatpush1.msra.mxu0 0.0
      %1022 = vmatprep.subr.mxu0 0.0
      %1023 = vmatpush1.msra.mxu0 0.0
      %1024 = vmatprep.subr.mxu0 0.0
      %1025 = vmatpush1.msra.mxu0 0.0
      %1026 = vmatprep.subr.mxu0 0.0
      %1027 = vmatpush1.msra.mxu0 0.0
      %1028 = vmatprep.subr.mxu0 0.0
      %1029 = vmatpush1.msra.mxu0 0.0
      %1030 = vmatprep.subr.mxu0 0.0
      %1031 = vmatpush1.msra.mxu0 0.0
      %1032 = vmatprep.subr.mxu0 0.0
      %1033 = vmatpush1.msra.mxu0 0.0
      %1034 = vmatprep.subr.mxu0 0.0
      %1035 = vmatpush1.msra.mxu0 0.0
      %1036 = vmatprep.subr.mxu0 0.0
      %1037 = vmatpush1.msra.mxu0 0.0
      %1038 = vmatprep.subr.mxu0 0.0
      %1039 = vmatpush1.msra.mxu0 0.0
      %1040 = vmatprep.subr.mxu0 0.0
      %1041 = vmatpush1.msra.mxu0 0.0
      %1042 = vmatprep.subr.mxu0 0.0
      %1043 = vmatpush1.msra.mxu0 0.0
      %1044 = vmatprep.subr.mxu0 0.0
      %1045 = vmatpush1.msra.mxu0 0.0
      %1046 = vmatprep.subr.mxu0 0.0
      %1047 = vmatpush1.msra.mxu0 0.0
      %1048 = vmatprep.subr.mxu0 0.0
      %1049 = vmatpush1.msra.mxu0 0.0
      %1050 = vmatprep.subr.mxu0 0.0
      %1051 = vmatpush1.msra.mxu0 0.0
      %1052 = vmatprep.subr.mxu0 0.0
      %1053 = vmatpush1.msra.mxu0 0.0
      %1054 = vmatprep.subr.mxu0 0.0
      %1055 = vmatpush1.msra.mxu0 0.0
      %1056 = vmatprep.subr.mxu0 0.0
      %1057 = vmatpush1.msra.mxu0 0.0
      %1058 = vmatprep.subr.mxu0 0.0
      %1059 = vmatpush1.msra.mxu0 0.0
      %1060 = vmatprep.subr.mxu0 0.0
      %1061 = vmatpush1.msra.mxu0 0.0
      %1062 = vmatprep.subr.mxu0 0.0
      %1063 = vmatpush1.msra.mxu0 0.0
      %1064 = vmatprep.subr.mxu0 0.0
      %1065 = vmatpush1.msra.mxu0 0.0
      %1066 = vmatprep.subr.mxu0 0.0
      %1067 = vmatpush1.msra.mxu0 0.0
      %1068 = vmatprep.mubr.f32.mxu0 0.0
      %1069 = vmatmul.mubr.f32.gmra.mrb[0].mxu0 %v431
      %v1070 = vpop.f32.mrb[0].mxu0
      %v1071 = vadd.f32 0.0, %v1070
      %v1072 = vpop.f32.mrb[0].mxu0
      %1073 = vmatprep.mubr.f32.mxu0 0.0
      %1074 = vmatmul.mubr.f32.gmra.mrb[0].mxu0 %v434
      %v1075 = vpop.f32.mrb[0].mxu0
      %v1076 = vadd.f32 0.0, %v1075
      %v1077 = vpop.f32.mrb[0].mxu0
      %1078 = vmatprep.mubr.f32.mxu0 0.0
      %1079 = vmatmul.mubr.f32.gmra.mrb[0].mxu0 %v437
      %v1080 = vpop.f32.mrb[0].mxu0
      %v1081 = vadd.f32 0.0, %v1080
      %v1082 = vpop.f32.mrb[0].mxu0
      %1083 = vmatprep.mubr.f32.mxu0 0.0
      %1084 = vmatmul.mubr.f32.gmra.mrb[0].mxu0 %v440
      %v1085 = vpop.f32.mrb[0].mxu0
      %v1086 = vadd.f32 0.0, %v1085
      %v1087 = vpop.f32.mrb[0].mxu0
      %1088 = vmatprep.mubr.f32.mxu0 0.0
      %1089 = vmatmul.mubr.f32.gmra.mrb[0].mxu0 %v443
      %v1090 = vpop.f32.mrb[0].mxu0
      %v1091 = vadd.f32 0.0, %v1090
      %v1092 = vpop.f32.mrb[0].mxu0
      %1093 = vmatprep.mubr.f32.mxu0 0.0
      %1094 = vmatmul.mubr.f32.gmra.mrb[0].mxu0 %v446
      %v1095 = vpop.f32.mrb[0].mxu0
      %v1096 = vadd.f32 0.0, %v1095
      %v1097 = vpop.f32.mrb[0].mxu0
      %1098 = vmatprep.mubr.f32.mxu0 0.0
      %1099 = vmatmul.mubr.f32.gmra.mrb[0].mxu0 %v449
      %v1100 = vpop.f32.mrb[0].mxu0
      %v1101 = vadd.f32 0.0, %v1100
      %v1102 = vpop.f32.mrb[0].mxu0
      %1103 = vmatprep.mubr.f32.mxu0 0.0
      %1104 = vmatmul.mubr.f32.gmra.mrb[0].mxu0 %v452
      %v1105 = vpop.f32.mrb[0].mxu0
      %v1106 = vadd.f32 0.0, %v1105
      %v1107 = vpop.f32.mrb[0].mxu0
      %1108 = vdwg.mxu0
      %v1109 = vld [vmem:[%s5] sm:$0xff]
      %v1110 = vld [vmem:[%s5 + $0x8] sm:$0xff]
      %v1111 = vld [vmem:[%s5 + $0x10] sm:$0xff]
      %v1112 = vld [vmem:[%s5 + $0x18] sm:$0xff]
      %v1114 = vsel %vm347, %v1071, 0
      %v1117 = vsel %vm347, %v1076, 0
      %1119 = vmatprep.subr.mxu0 0.0
      %1120 = vmatpush1.msra.mxu0 %v1109
      %1121 = vmatprep.subr.mxu0 0.0
      %1122 = vmatpush1.msra.mxu0 %v1110
      %1123 = vmatprep.subr.mxu0 0.0
      %1124 = vmatpush1.msra.mxu0 %v1111
      %1125 = vmatprep.subr.mxu0 0.0
      %1126 = vmatpush1.msra.mxu0 %v1112
      %1127 = vmatprep.subr.mxu0 0.0
      %1128 = vmatpush1.msra.mxu0 0.0
      %1129 = vmatprep.subr.mxu0 0.0
      %1130 = vmatpush1.msra.mxu0 0.0
      %1131 = vmatprep.subr.mxu0 0.0
      %1132 = vmatpush1.msra.mxu0 0.0
      %1133 = vmatprep.subr.mxu0 0.0
      %1134 = vmatpush1.msra.mxu0 0.0
      %1135 = vmatprep.subr.mxu0 0.0
      %1136 = vmatpush1.msra.mxu0 0.0
      %1137 = vmatprep.subr.mxu0 0.0
      %1138 = vmatpush1.msra.mxu0 0.0
      %1139 = vmatprep.subr.mxu0 0.0
      %1140 = vmatpush1.msra.mxu0 0.0
      %1141 = vmatprep.subr.mxu0 0.0
      %1142 = vmatpush1.msra.mxu0 0.0
      %1143 = vmatprep.subr.mxu0 0.0
      %1144 = vmatpush1.msra.mxu0 0.0
      %1145 = vmatprep.subr.mxu0 0.0
      %1146 = vmatpush1.msra.mxu0 0.0
      %1147 = vmatprep.subr.mxu0 0.0
      %1148 = vmatpush1.msra.mxu0 0.0
      %1149 = vmatprep.subr.mxu0 0.0
      %1150 = vmatpush1.msra.mxu0 0.0
      %1151 = vmatprep.subr.mxu0 0.0
      %1152 = vmatpush1.msra.mxu0 0.0
      %1153 = vmatprep.subr.mxu0 0.0
      %1154 = vmatpush1.msra.mxu0 0.0
      %1155 = vmatprep.subr.mxu0 0.0
      %1156 = vmatpush1.msra.mxu0 0.0
      %1157 = vmatprep.subr.mxu0 0.0
      %1158 = vmatpush1.msra.mxu0 0.0
      %1159 = vmatprep.subr.mxu0 0.0
      %1160 = vmatpush1.msra.mxu0 0.0
      %1161 = vmatprep.subr.mxu0 0.0
      %1162 = vmatpush1.msra.mxu0 0.0
      %1163 = vmatprep.subr.mxu0 0.0
      %1164 = vmatpush1.msra.mxu0 0.0
      %1165 = vmatprep.subr.mxu0 0.0
      %1166 = vmatpush1.msra.mxu0 0.0
      %1167 = vmatprep.subr.mxu0 0.0
      %1168 = vmatpush1.msra.mxu0 0.0
      %1169 = vmatprep.subr.mxu0 0.0
      %1170 = vmatpush1.msra.mxu0 0.0
      %1171 = vmatprep.subr.mxu0 0.0
      %1172 = vmatpush1.msra.mxu0 0.0
      %1173 = vmatprep.subr.mxu0 0.0
      %1174 = vmatpush1.msra.mxu0 0.0
      %1175 = vmatprep.subr.mxu0 0.0
      %1176 = vmatpush1.msra.mxu0 0.0
      %1177 = vmatprep.subr.mxu0 0.0
      %1178 = vmatpush1.msra.mxu0 0.0
      %1179 = vmatprep.subr.mxu0 0.0
      %1180 = vmatpush1.msra.mxu0 0.0
      %1181 = vmatprep.subr.mxu0 0.0
      %1182 = vmatpush1.msra.mxu0 0.0
      %1183 = vmatprep.mubr.f32.mxu0 0.0
      %1184 = vmatmul.mubr.f32.gmra.mrb[0].mxu0 %v1114
      %v1185 = vpop.f32.mrb[0].mxu0
      %v1186 = vadd.f32 0.0, %v1185
      %v1187 = vpop.f32.mrb[0].mxu0
      %1188 = vmatprep.mubr.f32.mxu0 0.0
      %1189 = vmatmul.mubr.f32.gmra.mrb[0].mxu0 %v1117
      %v1190 = vpop.f32.mrb[0].mxu0
      %v1191 = vadd.f32 0.0, %v1190
      %v1192 = vpop.f32.mrb[0].mxu0
      %1193 = vdwg.mxu0
      %v1194 = vadd.f32 %v996, %v1186
      %v1195 = vadd.f32 %v1001, %v1191
      %s1196 = scalar_lea.vmem %s5, 32
      %v1197 = vld [vmem:[%s1196] sm:$0xff]
      %v1198 = vld [vmem:[%s1196 + $0x8] sm:$0xff]
      %v1199 = vld [vmem:[%s1196 + $0x10] sm:$0xff]
      %v1200 = vld [vmem:[%s1196 + $0x18] sm:$0xff]
      %v1202 = vsel %vm347, %v1081, 0
      %v1205 = vsel %vm347, %v1086, 0
      %1207 = vmatprep.subr.mxu0 0.0
      %1208 = vmatpush1.msra.mxu0 %v1197
      %1209 = vmatprep.subr.mxu0 0.0
      %1210 = vmatpush1.msra.mxu0 %v1198
      %1211 = vmatprep.subr.mxu0 0.0
      %1212 = vmatpush1.msra.mxu0 %v1199
      %1213 = vmatprep.subr.mxu0 0.0
      %1214 = vmatpush1.msra.mxu0 %v1200
      %1215 = vmatprep.subr.mxu0 0.0
      %1216 = vmatpush1.msra.mxu0 0.0
      %1217 = vmatprep.subr.mxu0 0.0
      %1218 = vmatpush1.msra.mxu0 0.0
      %1219 = vmatprep.subr.mxu0 0.0
      %1220 = vmatpush1.msra.mxu0 0.0
      %1221 = vmatprep.subr.mxu0 0.0
      %1222 = vmatpush1.msra.mxu0 0.0
      %1223 = vmatprep.subr.mxu0 0.0
      %1224 = vmatpush1.msra.mxu0 0.0
      %1225 = vmatprep.subr.mxu0 0.0
      %1226 = vmatpush1.msra.mxu0 0.0
      %1227 = vmatprep.subr.mxu0 0.0
      %1228 = vmatpush1.msra.mxu0 0.0
      %1229 = vmatprep.subr.mxu0 0.0
      %1230 = vmatpush1.msra.mxu0 0.0
      %1231 = vmatprep.subr.mxu0 0.0
      %1232 = vmatpush1.msra.mxu0 0.0
      %1233 = vmatprep.subr.mxu0 0.0
      %1234 = vmatpush1.msra.mxu0 0.0
      %1235 = vmatprep.subr.mxu0 0.0
      %1236 = vmatpush1.msra.mxu0 0.0
      %1237 = vmatprep.subr.mxu0 0.0
      %1238 = vmatpush1.msra.mxu0 0.0
      %1239 = vmatprep.subr.mxu0 0.0
      %1240 = vmatpush1.msra.mxu0 0.0
      %1241 = vmatprep.subr.mxu0 0.0
      %1242 = vmatpush1.msra.mxu0 0.0
      %1243 = vmatprep.subr.mxu0 0.0
      %1244 = vmatpush1.msra.mxu0 0.0
      %1245 = vmatprep.subr.mxu0 0.0
      %1246 = vmatpush1.msra.mxu0 0.0
      %1247 = vmatprep.subr.mxu0 0.0
      %1248 = vmatpush1.msra.mxu0 0.0
      %1249 = vmatprep.subr.mxu0 0.0
      %1250 = vmatpush1.msra.mxu0 0.0
      %1251 = vmatprep.subr.mxu0 0.0
      %1252 = vmatpush1.msra.mxu0 0.0
      %1253 = vmatprep.subr.mxu0 0.0
      %1254 = vmatpush1.msra.mxu0 0.0
      %1255 = vmatprep.subr.mxu0 0.0
      %1256 = vmatpush1.msra.mxu0 0.0
      %1257 = vmatprep.subr.mxu0 0.0
      %1258 = vmatpush1.msra.mxu0 0.0
      %1259 = vmatprep.subr.mxu0 0.0
      %1260 = vmatpush1.msra.mxu0 0.0
      %1261 = vmatprep.subr.mxu0 0.0
      %1262 = vmatpush1.msra.mxu0 0.0
      %1263 = vmatprep.subr.mxu0 0.0
      %1264 = vmatpush1.msra.mxu0 0.0
      %1265 = vmatprep.subr.mxu0 0.0
      %1266 = vmatpush1.msra.mxu0 0.0
      %1267 = vmatprep.subr.mxu0 0.0
      %1268 = vmatpush1.msra.mxu0 0.0
      %1269 = vmatprep.subr.mxu0 0.0
      %1270 = vmatpush1.msra.mxu0 0.0
      %1271 = vmatprep.mubr.f32.mxu0 0.0
      %1272 = vmatmul.mubr.f32.gmra.mrb[0].mxu0 %v1202
      %v1273 = vpop.f32.mrb[0].mxu0
      %v1274 = vadd.f32 0.0, %v1273
      %v1275 = vpop.f32.mrb[0].mxu0
      %1276 = vmatprep.mubr.f32.mxu0 0.0
      %1277 = vmatmul.mubr.f32.gmra.mrb[0].mxu0 %v1205
      %v1278 = vpop.f32.mrb[0].mxu0
      %v1279 = vadd.f32 0.0, %v1278
      %v1280 = vpop.f32.mrb[0].mxu0
      %1281 = vdwg.mxu0
      %v1282 = vadd.f32 %v1194, %v1274
      %v1283 = vadd.f32 %v1195, %v1279
      %s1284 = scalar_lea.vmem %s5, 64
      %v1285 = vld [vmem:[%s1284] sm:$0xff]
      %v1286 = vld [vmem:[%s1284 + $0x8] sm:$0xff]
      %v1287 = vld [vmem:[%s1284 + $0x10] sm:$0xff]
      %v1288 = vld [vmem:[%s1284 + $0x18] sm:$0xff]
      %v1290 = vsel %vm347, %v1091, 0
      %v1293 = vsel %vm347, %v1096, 0
      %1295 = vmatprep.subr.mxu0 0.0
      %1296 = vmatpush1.msra.mxu0 %v1285
      %1297 = vmatprep.subr.mxu0 0.0
      %1298 = vmatpush1.msra.mxu0 %v1286
      %1299 = vmatprep.subr.mxu0 0.0
      %1300 = vmatpush1.msra.mxu0 %v1287
      %1301 = vmatprep.subr.mxu0 0.0
      %1302 = vmatpush1.msra.mxu0 %v1288
      %1303 = vmatprep.subr.mxu0 0.0
      %1304 = vmatpush1.msra.mxu0 0.0
      %1305 = vmatprep.subr.mxu0 0.0
      %1306 = vmatpush1.msra.mxu0 0.0
      %1307 = vmatprep.subr.mxu0 0.0
      %1308 = vmatpush1.msra.mxu0 0.0
      %1309 = vmatprep.subr.mxu0 0.0
      %1310 = vmatpush1.msra.mxu0 0.0
      %1311 = vmatprep.subr.mxu0 0.0
      %1312 = vmatpush1.msra.mxu0 0.0
      %1313 = vmatprep.subr.mxu0 0.0
      %1314 = vmatpush1.msra.mxu0 0.0
      %1315 = vmatprep.subr.mxu0 0.0
      %1316 = vmatpush1.msra.mxu0 0.0
      %1317 = vmatprep.subr.mxu0 0.0
      %1318 = vmatpush1.msra.mxu0 0.0
      %1319 = vmatprep.subr.mxu0 0.0
      %1320 = vmatpush1.msra.mxu0 0.0
      %1321 = vmatprep.subr.mxu0 0.0
      %1322 = vmatpush1.msra.mxu0 0.0
      %1323 = vmatprep.subr.mxu0 0.0
      %1324 = vmatpush1.msra.mxu0 0.0
      %1325 = vmatprep.subr.mxu0 0.0
      %1326 = vmatpush1.msra.mxu0 0.0
      %1327 = vmatprep.subr.mxu0 0.0
      %1328 = vmatpush1.msra.mxu0 0.0
      %1329 = vmatprep.subr.mxu0 0.0
      %1330 = vmatpush1.msra.mxu0 0.0
      %1331 = vmatprep.subr.mxu0 0.0
      %1332 = vmatpush1.msra.mxu0 0.0
      %1333 = vmatprep.subr.mxu0 0.0
      %1334 = vmatpush1.msra.mxu0 0.0
      %1335 = vmatprep.subr.mxu0 0.0
      %1336 = vmatpush1.msra.mxu0 0.0
      %1337 = vmatprep.subr.mxu0 0.0
      %1338 = vmatpush1.msra.mxu0 0.0
      %1339 = vmatprep.subr.mxu0 0.0
      %1340 = vmatpush1.msra.mxu0 0.0
      %1341 = vmatprep.subr.mxu0 0.0
      %1342 = vmatpush1.msra.mxu0 0.0
      %1343 = vmatprep.subr.mxu0 0.0
      %1344 = vmatpush1.msra.mxu0 0.0
      %1345 = vmatprep.subr.mxu0 0.0
      %1346 = vmatpush1.msra.mxu0 0.0
      %1347 = vmatprep.subr.mxu0 0.0
      %1348 = vmatpush1.msra.mxu0 0.0
      %1349 = vmatprep.subr.mxu0 0.0
      %1350 = vmatpush1.msra.mxu0 0.0
      %1351 = vmatprep.subr.mxu0 0.0
      %1352 = vmatpush1.msra.mxu0 0.0
      %1353 = vmatprep.subr.mxu0 0.0
      %1354 = vmatpush1.msra.mxu0 0.0
      %1355 = vmatprep.subr.mxu0 0.0
      %1356 = vmatpush1.msra.mxu0 0.0
      %1357 = vmatprep.subr.mxu0 0.0
      %1358 = vmatpush1.msra.mxu0 0.0
      %1359 = vmatprep.mubr.f32.mxu0 0.0
      %1360 = vmatmul.mubr.f32.gmra.mrb[0].mxu0 %v1290
      %v1361 = vpop.f32.mrb[0].mxu0
      %v1362 = vadd.f32 0.0, %v1361
      %v1363 = vpop.f32.mrb[0].mxu0
      %1364 = vmatprep.mubr.f32.mxu0 0.0
      %1365 = vmatmul.mubr.f32.gmra.mrb[0].mxu0 %v1293
      %v1366 = vpop.f32.mrb[0].mxu0
      %v1367 = vadd.f32 0.0, %v1366
      %v1368 = vpop.f32.mrb[0].mxu0
      %1369 = vdwg.mxu0
      %v1370 = vadd.f32 %v1282, %v1362
      %v1371 = vadd.f32 %v1283, %v1367
      %s1372 = scalar_lea.vmem %s5, 96
      %v1373 = vld [vmem:[%s1372] sm:$0xff]
      %v1374 = vld [vmem:[%s1372 + $0x8] sm:$0xff]
      %v1375 = vld [vmem:[%s1372 + $0x10] sm:$0xff]
      %v1376 = vld [vmem:[%s1372 + $0x18] sm:$0xff]
      %v1378 = vsel %vm347, %v1101, 0
      %v1381 = vsel %vm347, %v1106, 0
      %1383 = vmatprep.subr.mxu0 0.0
      %1384 = vmatpush1.msra.mxu0 %v1373
      %1385 = vmatprep.subr.mxu0 0.0
      %1386 = vmatpush1.msra.mxu0 %v1374
      %1387 = vmatprep.subr.mxu0 0.0
      %1388 = vmatpush1.msra.mxu0 %v1375
      %1389 = vmatprep.subr.mxu0 0.0
      %1390 = vmatpush1.msra.mxu0 %v1376
      %1391 = vmatprep.subr.mxu0 0.0
      %1392 = vmatpush1.msra.mxu0 0.0
      %1393 = vmatprep.subr.mxu0 0.0
      %1394 = vmatpush1.msra.mxu0 0.0
      %1395 = vmatprep.subr.mxu0 0.0
      %1396 = vmatpush1.msra.mxu0 0.0
      %1397 = vmatprep.subr.mxu0 0.0
      %1398 = vmatpush1.msra.mxu0 0.0
      %1399 = vmatprep.subr.mxu0 0.0
      %1400 = vmatpush1.msra.mxu0 0.0
      %1401 = vmatprep.subr.mxu0 0.0
      %1402 = vmatpush1.msra.mxu0 0.0
      %1403 = vmatprep.subr.mxu0 0.0
      %1404 = vmatpush1.msra.mxu0 0.0
      %1405 = vmatprep.subr.mxu0 0.0
      %1406 = vmatpush1.msra.mxu0 0.0
      %1407 = vmatprep.subr.mxu0 0.0
      %1408 = vmatpush1.msra.mxu0 0.0
      %1409 = vmatprep.subr.mxu0 0.0
      %1410 = vmatpush1.msra.mxu0 0.0
      %1411 = vmatprep.subr.mxu0 0.0
      %1412 = vmatpush1.msra.mxu0 0.0
      %1413 = vmatprep.subr.mxu0 0.0
      %1414 = vmatpush1.msra.mxu0 0.0
      %1415 = vmatprep.subr.mxu0 0.0
      %1416 = vmatpush1.msra.mxu0 0.0
      %1417 = vmatprep.subr.mxu0 0.0
      %1418 = vmatpush1.msra.mxu0 0.0
      %1419 = vmatprep.subr.mxu0 0.0
      %1420 = vmatpush1.msra.mxu0 0.0
      %1421 = vmatprep.subr.mxu0 0.0
      %1422 = vmatpush1.msra.mxu0 0.0
      %1423 = vmatprep.subr.mxu0 0.0
      %1424 = vmatpush1.msra.mxu0 0.0
      %1425 = vmatprep.subr.mxu0 0.0
      %1426 = vmatpush1.msra.mxu0 0.0
      %1427 = vmatprep.subr.mxu0 0.0
      %1428 = vmatpush1.msra.mxu0 0.0
      %1429 = vmatprep.subr.mxu0 0.0
      %1430 = vmatpush1.msra.mxu0 0.0
      %1431 = vmatprep.subr.mxu0 0.0
      %1432 = vmatpush1.msra.mxu0 0.0
      %1433 = vmatprep.subr.mxu0 0.0
      %1434 = vmatpush1.msra.mxu0 0.0
      %1435 = vmatprep.subr.mxu0 0.0
      %1436 = vmatpush1.msra.mxu0 0.0
      %1437 = vmatprep.subr.mxu0 0.0
      %1438 = vmatpush1.msra.mxu0 0.0
      %1439 = vmatprep.subr.mxu0 0.0
      %1440 = vmatpush1.msra.mxu0 0.0
      %1441 = vmatprep.subr.mxu0 0.0
      %1442 = vmatpush1.msra.mxu0 0.0
      %1443 = vmatprep.subr.mxu0 0.0
      %1444 = vmatpush1.msra.mxu0 0.0
      %1445 = vmatprep.subr.mxu0 0.0
      %1446 = vmatpush1.msra.mxu0 0.0
      %1447 = vmatprep.mubr.f32.mxu0 0.0
      %1448 = vmatmul.mubr.f32.gmra.mrb[0].mxu0 %v1378
      %v1449 = vpop.f32.mrb[0].mxu0
      %v1450 = vadd.f32 0.0, %v1449
      %v1451 = vpop.f32.mrb[0].mxu0
      %1452 = vmatprep.mubr.f32.mxu0 0.0
      %1453 = vmatmul.mubr.f32.gmra.mrb[0].mxu0 %v1381
      %v1454 = vpop.f32.mrb[0].mxu0
      %v1455 = vadd.f32 0.0, %v1454
      %v1456 = vpop.f32.mrb[0].mxu0
      %1457 = vdwg.mxu0
      %v1458 = vadd.f32 %v1370, %v1450
      %v1459 = vadd.f32 %v1371, %v1455
      %1462 = vrot.lane.b32.xlu0 %v1458, 32
      %v1463 = vpop.permute.xlu0 %1462
      %1464 = vrot.lane.b32.xlu0 %v1459, 32
      %v1465 = vpop.permute.xlu0 %1464
      %v1468 = vsel %vm347, %v910, %v1463
      %v1469 = vsel %vm347, %v911, %v1465
      %vm1470 = vcmask 392192
      %v1471 = vsel %vm1470, %v1468, 0.0
      %v1472 = vsel %vm1470, %v1469, 0.0
      %1473 = vst [vmem:[%s325] sm:$0xff] %v1471
      %1474 = vst [vmem:[%s325 + $0x8] sm:$0xff] %v1472
      %p1475 = scmp.lt.s32.totalorder %s19, 7
      %s1476 = scalar_select %p1475, %s19, 7
      %s1477 = smul.addr %s1476, 2
      %s1478 = smul.addr %s1477, 8
      %s1479 = scalar_lea.vmem %s8, %s1478
      // Predicated region
      $region53: #{rgcn_forward_batched.1} parent=51 // pred_check
        %p1480 = pneg %p215
      $region54: #{rgcn_forward_batched.1} parent=51 // pred_check_branch
        %1482 = sbr.rel (%p1480) target = $region56
      $region55: #{rgcn_forward_batched.1} parent=51 // pred_region
        _
      $region56: #{rgcn_forward_batched.1} parent=51 // pred_fallthru
        _
    $region52: #{rgcn_forward_batched.1} parent=5 // pred_fallthru
      _
    %p1483 = scmp.le.s32.totalorder 2, %s14
    // Predicated region
    $region57: #{rgcn_forward_batched.1} parent=5 // pred_check
      %p1484 = pneg %p1483
    $region58: #{rgcn_forward_batched.1} parent=5 // pred_check_branch
      %1486 = sbr.rel (%p1484) target = $region60
    $region59: #{rgcn_forward_batched.1} parent=5 // pred_region
      %s1487 = ssub.s32 %s14, 2
      // Predicated region
      $region61: #{rgcn_forward_batched.1} parent=59 // pred_check
        %p1488 = pneg %p221
      $region62: #{rgcn_forward_batched.1} parent=59 // pred_check_branch
        %1490 = sbr.rel (%p1488) target = $region64
      $region63: #{rgcn_forward_batched.1} parent=59 // pred_region
        %p1491 = scmp.lt.s32.totalorder %s20, 7
        %s1492 = scalar_select %p1491, %s20, 7
        %s1493 = smul.addr %s1492, 2
        %s1494 = smul.addr %s1493, 8
        %s1495 = scalar_lea.vmem %s8, %s1494
      $region64: #{rgcn_forward_batched.1} parent=59 // pred_fallthru
        _
    $region60: #{rgcn_forward_batched.1} parent=5 // pred_fallthru
      _
  $region6: #{rgcn_forward_batched.1} parent=0 // loop_footer
    %s18 = sadd.s32 1, %s14
  $region7: #{rgcn_forward_batched.1} parent=0 // loop_footer_branch
    %13 = sbr.rel target = $region3
  $region8: #{rgcn_forward_batched.1} parent=0 // loop_exit
    _

</llo_original>
